<compile_context>
chip_gen: v7x
topology: tpu7x:2x2x1
jax: 0.10.0
libtpu: 0.0.40
codegen_flags: <defaults>
</compile_context>

<pallas_src>
import jax
import jax.numpy as jnp
from jax import lax
from jax.experimental import pallas as pl
from jax.experimental.pallas import tpu as pltpu

PATCH = 7
PAD = PATCH // 2  # 3


def _make_kernel(H, W, tile_h, w_lanes):
    """Builds the kernel closed over the static shape parameters."""
    ext_h = tile_h + PAD                       # rows of the extended census field
    inv49 = 1.0 / float(PATCH * PATCH)

    def shift_lanes(g, dx):
        # out[:, x] == g[:, (x + dx) mod w_lanes]   (cyclic lane roll; wrapped
        # lanes are never read for valid output columns since
        # w_lanes >= W + 2*PAD, and all values stay finite so mask*garbage==0).
        if dx == 0:
            return g
        return pltpu.roll(g, (-dx) % w_lanes, axis=1)

    def f(t):
        # census normalisation: t / sqrt(0.81 + t^2)
        return t * lax.rsqrt(0.81 + t * t)

    def kernel(g0_ref, g1_ref, out_ref):
        # g refs: (tile_h + 6, w_lanes) zero-padded gray tile (6-row halo)
        # out_ref: (tile_h, w_lanes)
        t_idx = pl.program_id(1)

        g0 = g0_ref[...]
        g1 = g1_ref[...]

        # Extended center field in padded-column layout: C[r, j] = G[r+3, j].
        c0 = g0[PAD:PAD + ext_h, :]
        c1 = g1[PAD:PAD + ext_h, :]

        acc = jnp.zeros((tile_h, w_lanes), jnp.float32)

        # Offsets processed in symmetric pairs: h_{6-o}(p) = h_o(p + 3 - o).
        # Only S = {dy<3} U {dy==3, dx<3} (24 offsets) is computed; mirrors are
        # accumulated via a row slice + one shared lane roll per dx group.
        for dx in range(PATCH):
            dys = range(PAD + 1) if dx < PAD else range(PAD)
            s0 = shift_lanes(g0, dx - PAD)     # neighbor columns for this dx
            s1 = shift_lanes(g1, dx - PAD)
            pair = jnp.zeros((tile_h, w_lanes), jnp.float32)
            for dy in dys:
                n0 = s0[dy:dy + ext_h, :]      # G[r+dy, j+dx-3]
                n1 = s1[dy:dy + ext_h, :]
                t0n = f(n0 - c0)
                t1n = f(n1 - c1)
                d = (t0n - t1n) ** 2
                h = pl.reciprocal(0.1 + d, approx=True)        # 1/(0.1+d)
                acc = acc + h[:tile_h, :]                       # offset o
                pair = pair + h[PAD - dy:PAD - dy + tile_h, :]  # offset 6-o
            acc = acc + shift_lanes(pair, PAD - dx)

        # Back to output-column layout; fold center offset + mean:
        #   mean_o d/(0.1+d) = 48/49 - (0.1/49) * sum_{o != center} 1/(0.1+d_o)
        a = shift_lanes(acc, PAD)
        dist = (48.0 * inv49) - (0.1 * inv49) * a

        # valid_mask(padding=1) in global coordinates; also zeroes the padded
        # lane columns (>= W) and padded bottom rows (>= H).
        row = (lax.broadcasted_iota(jnp.int32, (tile_h, w_lanes), 0)
               + t_idx * tile_h)
        col = lax.broadcasted_iota(jnp.int32, (tile_h, w_lanes), 1)
        mask = ((row >= 1) & (row < H - 1) &
                (col >= 1) & (col < W - 1)).astype(jnp.float32)

        out_ref[...] = dist * mask

    return kernel


def ternary(img0, img1, tile_h=128):
    """Pallas implementation of Ternary.forward(img0, img1) -> [N, 1, H, W]."""
    N, C, H, W = img0.shape
    assert C == 3, "expects RGB NCHW inputs"

    def gray(x):  # rgb2gray on the host: fuses into the XLA pad, 3x less DMA
        x = x.astype(jnp.float32)
        return 0.2989 * x[:, 0] + 0.587 * x[:, 1] + 0.114 * x[:, 2]  # (N, H, W)

    g0 = gray(img0)
    g1 = gray(img1)

    th = min(tile_h, H)                       # rows per tile
    num_tiles = pl.cdiv(H, th)
    h_pad = num_tiles * th
    # lane-dense width (multiple of 128), large enough for the +6 halo reads
    w_lanes = ((W + 2 * PAD + 127) // 128) * 128

    rows = (jnp.arange(num_tiles)[:, None] * th
            + jnp.arange(th + 2 * PAD)[None, :])        # (num_tiles, th + 6)

    def prep(g):
        gp = jnp.pad(g, ((0, 0),
                         (PAD, h_pad - H + PAD),
                         (PAD, w_lanes - W - PAD)))
        # overlapping row tiles with a 6-row halo: (N, num_tiles, th+6, w_lanes)
        return gp[:, rows, :]

    x0 = prep(g0)
    x1 = prep(g1)

    kernel = _make_kernel(H, W, th, w_lanes)
    blk_in = (None, None, th + 2 * PAD, w_lanes)
    blk_out = (None, None, th, w_lanes)

    out = pl.pallas_call(
        kernel,
        out_shape=jax.ShapeDtypeStruct((N, num_tiles, th, w_lanes), jnp.float32),
        grid_spec=pltpu.PrefetchScalarGridSpec(
            num_scalar_prefetch=0,
            grid=(N, num_tiles),
            in_specs=[
                pl.BlockSpec(blk_in, lambda n, t: (n, t, 0, 0)),
                pl.BlockSpec(blk_in, lambda n, t: (n, t, 0, 0)),
            ],
            out_specs=pl.BlockSpec(blk_out, lambda n, t: (n, t, 0, 0)),
        ),
        compiler_params=pltpu.CompilerParams(
            dimension_semantics=("parallel", "parallel"),
            vmem_limit_bytes=48 * 1024 * 1024,
        ),
    )(x0, x1)

    # (N, num_tiles, th, w_lanes) -> (N, h_pad, w_lanes) -> crop -> NCHW
    out = out.reshape(N, h_pad, w_lanes)[:, :H, :W]
    return out[:, None, :, :]


def ternary_ref(img0, img1):
    """Pure-JAX reference mirroring the PyTorch module (for verification)."""
    def gray(x):
        return 0.2989 * x[:, 0:1] + 0.587 * x[:, 1:2] + 0.114 * x[:, 2:3]

    def transform(g):
        N, _, H, W = g.shape
        gp = jnp.pad(g, ((0, 0), (0, 0), (PAD, PAD), (PAD, PAD)))
        patches = jnp.stack(
            [gp[:, 0, dy:dy + H, dx:dx + W]
             for dy in range(PATCH) for dx in range(PATCH)], axis=1)
        t = patches - g
        return t / jnp.sqrt(0.81 + t ** 2)

    t0 = transform(gray(img0.astype(jnp.float32)))
    t1 = transform(gray(img1.astype(jnp.float32)))
    d = (t0 - t1) ** 2
    dn = jnp.mean(d / (0.1 + d), axis=1, keepdims=True)
    _, _, H, W = dn.shape
    mask = jnp.zeros((H, W), jnp.float32).at[1:-1, 1:-1].set(1.0)
    return dn * mask[None, None]


if __name__ == "__main__":
    key = jax.random.PRNGKey(0)
    k0, k1 = jax.random.split(key)
    img0 = jax.random.uniform(k0, (2, 3, 16, 16), dtype=jnp.float32)
    img1 = jax.random.uniform(k1, (2, 3, 16, 16), dtype=jnp.float32)

    out = ternary(img0, img1)
    jax.block_until_ready(out)

    ref = ternary_ref(img0, img1)
    assert out.shape == (2, 1, 16, 16)
    # tolerance loosened slightly for the approx EUP reciprocal
    assert jnp.allclose(out, ref, atol=5e-3, rtol=5e-3), \
        float(jnp.max(jnp.abs(out - ref)))
    print("KERNEL_OK")
</pallas_src>

<mosaic_0001>
module attributes {stable_mosaic.version = 11 : i64} {
  func.func @kernel(%arg0: i32, %arg1: i32, %arg2: memref<1x1x22x128xf32, #tpu.memory_space<vmem>>, %arg3: memref<1x1x22x128xf32, #tpu.memory_space<vmem>>, %arg4: memref<1x1x16x128xf32, #tpu.memory_space<vmem>>) attributes {dimension_semantics = [#tpu.dimension_semantics<parallel>, #tpu.dimension_semantics<parallel>], iteration_bounds = array<i64: 2, 1>, scalar_prefetch = 0 : i64, scratch_operands = 0 : i64, tpu.core_type = #tpu.core_type<tc>, window_params = [{transform_indices = @transform_0, window_bounds = array<i64: 1, 1, 22, 128>}, {transform_indices = @transform_1, window_bounds = array<i64: 1, 1, 22, 128>}, {transform_indices = @transform_2, window_bounds = array<i64: 1, 1, 16, 128>}]} {
    %c0 = arith.constant 0 : index
    %c0_0 = arith.constant 0 : index
    %c0_1 = arith.constant 0 : index
    %c0_2 = arith.constant 0 : index
    %0 = vector.load %arg2[%c0, %c0_0, %c0_1, %c0_2] : memref<1x1x22x128xf32, #tpu.memory_space<vmem>>, vector<1x1x22x128xf32>
    %1 = vector.shape_cast %0 : vector<1x1x22x128xf32> to vector<22x128xf32>
    %c0_3 = arith.constant 0 : index
    %c0_4 = arith.constant 0 : index
    %c0_5 = arith.constant 0 : index
    %c0_6 = arith.constant 0 : index
    %2 = vector.load %arg3[%c0_3, %c0_4, %c0_5, %c0_6] : memref<1x1x22x128xf32, #tpu.memory_space<vmem>>, vector<1x1x22x128xf32>
    %3 = vector.shape_cast %2 : vector<1x1x22x128xf32> to vector<22x128xf32>
    %4 = vector.extract_strided_slice %1 {offsets = [3, 0], sizes = [19, 128], strides = [1, 1]} : vector<22x128xf32> to vector<19x128xf32>
    %5 = vector.extract_strided_slice %3 {offsets = [3, 0], sizes = [19, 128], strides = [1, 1]} : vector<22x128xf32> to vector<19x128xf32>
    %cst = arith.constant 0.000000e+00 : f32
    %6 = vector.broadcast %cst : f32 to vector<16x128xf32>
    %c3_i32 = arith.constant 3 : i32
    %7 = tpu.dynamic_rotate %1 by %c3_i32 dim 1 : vector<22x128xf32>, i32 -> vector<22x128xf32>
    %c3_i32_7 = arith.constant 3 : i32
    %8 = tpu.dynamic_rotate %3 by %c3_i32_7 dim 1 : vector<22x128xf32>, i32 -> vector<22x128xf32>
    %cst_8 = arith.constant 0.000000e+00 : f32
    %9 = vector.broadcast %cst_8 : f32 to vector<16x128xf32>
    %10 = vector.extract_strided_slice %7 {offsets = [0, 0], sizes = [19, 128], strides = [1, 1]} : vector<22x128xf32> to vector<19x128xf32>
    %11 = vector.extract_strided_slice %8 {offsets = [0, 0], sizes = [19, 128], strides = [1, 1]} : vector<22x128xf32> to vector<19x128xf32>
    %12 = arith.subf %10, %4 : vector<19x128xf32>
    %13 = arith.mulf %12, %12 : vector<19x128xf32>
    %cst_9 = arith.constant 8.100000e-01 : f32
    %14 = vector.broadcast %cst_9 : f32 to vector<19x128xf32>
    %15 = arith.addf %14, %13 : vector<19x128xf32>
    %16 = math.rsqrt %15 : vector<19x128xf32>
    %17 = arith.mulf %12, %16 : vector<19x128xf32>
    %18 = arith.subf %11, %5 : vector<19x128xf32>
    %19 = arith.mulf %18, %18 : vector<19x128xf32>
    %cst_10 = arith.constant 8.100000e-01 : f32
    %20 = vector.broadcast %cst_10 : f32 to vector<19x128xf32>
    %21 = arith.addf %20, %19 : vector<19x128xf32>
    %22 = math.rsqrt %21 : vector<19x128xf32>
    %23 = arith.mulf %18, %22 : vector<19x128xf32>
    %24 = arith.subf %17, %23 : vector<19x128xf32>
    %25 = arith.mulf %24, %24 : vector<19x128xf32>
    %cst_11 = arith.constant 1.000000e-01 : f32
    %26 = vector.broadcast %cst_11 : f32 to vector<19x128xf32>
    %27 = arith.addf %26, %25 : vector<19x128xf32>
    %28 = tpu.reciprocal %27 {approx = true} : vector<19x128xf32> -> vector<19x128xf32>
    %29 = vector.extract_strided_slice %28 {offsets = [0, 0], sizes = [16, 128], strides = [1, 1]} : vector<19x128xf32> to vector<16x128xf32>
    %30 = arith.addf %6, %29 : vector<16x128xf32>
    %31 = vector.extract_strided_slice %28 {offsets = [3, 0], sizes = [16, 128], strides = [1, 1]} : vector<19x128xf32> to vector<16x128xf32>
    %32 = arith.addf %9, %31 : vector<16x128xf32>
    %33 = vector.extract_strided_slice %7 {offsets = [1, 0], sizes = [19, 128], strides = [1, 1]} : vector<22x128xf32> to vector<19x128xf32>
    %34 = vector.extract_strided_slice %8 {offsets = [1, 0], sizes = [19, 128], strides = [1, 1]} : vector<22x128xf32> to vector<19x128xf32>
    %35 = arith.subf %33, %4 : vector<19x128xf32>
    %36 = arith.mulf %35, %35 : vector<19x128xf32>
    %cst_12 = arith.constant 8.100000e-01 : f32
    %37 = vector.broadcast %cst_12 : f32 to vector<19x128xf32>
    %38 = arith.addf %37, %36 : vector<19x128xf32>
    %39 = math.rsqrt %38 : vector<19x128xf32>
    %40 = arith.mulf %35, %39 : vector<19x128xf32>
    %41 = arith.subf %34, %5 : vector<19x128xf32>
    %42 = arith.mulf %41, %41 : vector<19x128xf32>
    %cst_13 = arith.constant 8.100000e-01 : f32
    %43 = vector.broadcast %cst_13 : f32 to vector<19x128xf32>
    %44 = arith.addf %43, %42 : vector<19x128xf32>
    %45 = math.rsqrt %44 : vector<19x128xf32>
    %46 = arith.mulf %41, %45 : vector<19x128xf32>
    %47 = arith.subf %40, %46 : vector<19x128xf32>
    %48 = arith.mulf %47, %47 : vector<19x128xf32>
    %cst_14 = arith.constant 1.000000e-01 : f32
    %49 = vector.broadcast %cst_14 : f32 to vector<19x128xf32>
    %50 = arith.addf %49, %48 : vector<19x128xf32>
    %51 = tpu.reciprocal %50 {approx = true} : vector<19x128xf32> -> vector<19x128xf32>
    %52 = vector.extract_strided_slice %51 {offsets = [0, 0], sizes = [16, 128], strides = [1, 1]} : vector<19x128xf32> to vector<16x128xf32>
    %53 = arith.addf %30, %52 : vector<16x128xf32>
    %54 = vector.extract_strided_slice %51 {offsets = [2, 0], sizes = [16, 128], strides = [1, 1]} : vector<19x128xf32> to vector<16x128xf32>
    %55 = arith.addf %32, %54 : vector<16x128xf32>
    %56 = vector.extract_strided_slice %7 {offsets = [2, 0], sizes = [19, 128], strides = [1, 1]} : vector<22x128xf32> to vector<19x128xf32>
    %57 = vector.extract_strided_slice %8 {offsets = [2, 0], sizes = [19, 128], strides = [1, 1]} : vector<22x128xf32> to vector<19x128xf32>
    %58 = arith.subf %56, %4 : vector<19x128xf32>
    %59 = arith.mulf %58, %58 : vector<19x128xf32>
    %cst_15 = arith.constant 8.100000e-01 : f32
    %60 = vector.broadcast %cst_15 : f32 to vector<19x128xf32>
    %61 = arith.addf %60, %59 : vector<19x128xf32>
    %62 = math.rsqrt %61 : vector<19x128xf32>
    %63 = arith.mulf %58, %62 : vector<19x128xf32>
    %64 = arith.subf %57, %5 : vector<19x128xf32>
    %65 = arith.mulf %64, %64 : vector<19x128xf32>
    %cst_16 = arith.constant 8.100000e-01 : f32
    %66 = vector.broadcast %cst_16 : f32 to vector<19x128xf32>
    %67 = arith.addf %66, %65 : vector<19x128xf32>
    %68 = math.rsqrt %67 : vector<19x128xf32>
    %69 = arith.mulf %64, %68 : vector<19x128xf32>
    %70 = arith.subf %63, %69 : vector<19x128xf32>
    %71 = arith.mulf %70, %70 : vector<19x128xf32>
    %cst_17 = arith.constant 1.000000e-01 : f32
    %72 = vector.broadcast %cst_17 : f32 to vector<19x128xf32>
    %73 = arith.addf %72, %71 : vector<19x128xf32>
    %74 = tpu.reciprocal %73 {approx = true} : vector<19x128xf32> -> vector<19x128xf32>
    %75 = vector.extract_strided_slice %74 {offsets = [0, 0], sizes = [16, 128], strides = [1, 1]} : vector<19x128xf32> to vector<16x128xf32>
    %76 = arith.addf %53, %75 : vector<16x128xf32>
    %77 = vector.extract_strided_slice %74 {offsets = [1, 0], sizes = [16, 128], strides = [1, 1]} : vector<19x128xf32> to vector<16x128xf32>
    %78 = arith.addf %55, %77 : vector<16x128xf32>
    %79 = vector.extract_strided_slice %7 {offsets = [3, 0], sizes = [19, 128], strides = [1, 1]} : vector<22x128xf32> to vector<19x128xf32>
    %80 = vector.extract_strided_slice %8 {offsets = [3, 0], sizes = [19, 128], strides = [1, 1]} : vector<22x128xf32> to vector<19x128xf32>
    %81 = arith.subf %79, %4 : vector<19x128xf32>
    %82 = arith.mulf %81, %81 : vector<19x128xf32>
    %cst_18 = arith.constant 8.100000e-01 : f32
    %83 = vector.broadcast %cst_18 : f32 to vector<19x128xf32>
    %84 = arith.addf %83, %82 : vector<19x128xf32>
    %85 = math.rsqrt %84 : vector<19x128xf32>
    %86 = arith.mulf %81, %85 : vector<19x128xf32>
    %87 = arith.subf %80, %5 : vector<19x128xf32>
    %88 = arith.mulf %87, %87 : vector<19x128xf32>
    %cst_19 = arith.constant 8.100000e-01 : f32
    %89 = vector.broadcast %cst_19 : f32 to vector<19x128xf32>
    %90 = arith.addf %89, %88 : vector<19x128xf32>
    %91 = math.rsqrt %90 : vector<19x128xf32>
    %92 = arith.mulf %87, %91 : vector<19x128xf32>
    %93 = arith.subf %86, %92 : vector<19x128xf32>
    %94 = arith.mulf %93, %93 : vector<19x128xf32>
    %cst_20 = arith.constant 1.000000e-01 : f32
    %95 = vector.broadcast %cst_20 : f32 to vector<19x128xf32>
    %96 = arith.addf %95, %94 : vector<19x128xf32>
    %97 = tpu.reciprocal %96 {approx = true} : vector<19x128xf32> -> vector<19x128xf32>
    %98 = vector.extract_strided_slice %97 {offsets = [0, 0], sizes = [16, 128], strides = [1, 1]} : vector<19x128xf32> to vector<16x128xf32>
    %99 = arith.addf %76, %98 : vector<16x128xf32>
    %100 = vector.extract_strided_slice %97 {offsets = [0, 0], sizes = [16, 128], strides = [1, 1]} : vector<19x128xf32> to vector<16x128xf32>
    %101 = arith.addf %78, %100 : vector<16x128xf32>
    %c125_i32 = arith.constant 125 : i32
    %102 = tpu.dynamic_rotate %101 by %c125_i32 dim 1 : vector<16x128xf32>, i32 -> vector<16x128xf32>
    %103 = arith.addf %99, %102 : vector<16x128xf32>
    %c2_i32 = arith.constant 2 : i32
    %104 = tpu.dynamic_rotate %1 by %c2_i32 dim 1 : vector<22x128xf32>, i32 -> vector<22x128xf32>
    %c2_i32_21 = arith.constant 2 : i32
    %105 = tpu.dynamic_rotate %3 by %c2_i32_21 dim 1 : vector<22x128xf32>, i32 -> vector<22x128xf32>
    %cst_22 = arith.constant 0.000000e+00 : f32
    %106 = vector.broadcast %cst_22 : f32 to vector<16x128xf32>
    %107 = vector.extract_strided_slice %104 {offsets = [0, 0], sizes = [19, 128], strides = [1, 1]} : vector<22x128xf32> to vector<19x128xf32>
    %108 = vector.extract_strided_slice %105 {offsets = [0, 0], sizes = [19, 128], strides = [1, 1]} : vector<22x128xf32> to vector<19x128xf32>
    %109 = arith.subf %107, %4 : vector<19x128xf32>
    %110 = arith.mulf %109, %109 : vector<19x128xf32>
    %cst_23 = arith.constant 8.100000e-01 : f32
    %111 = vector.broadcast %cst_23 : f32 to vector<19x128xf32>
    %112 = arith.addf %111, %110 : vector<19x128xf32>
    %113 = math.rsqrt %112 : vector<19x128xf32>
    %114 = arith.mulf %109, %113 : vector<19x128xf32>
    %115 = arith.subf %108, %5 : vector<19x128xf32>
    %116 = arith.mulf %115, %115 : vector<19x128xf32>
    %cst_24 = arith.constant 8.100000e-01 : f32
    %117 = vector.broadcast %cst_24 : f32 to vector<19x128xf32>
    %118 = arith.addf %117, %116 : vector<19x128xf32>
    %119 = math.rsqrt %118 : vector<19x128xf32>
    %120 = arith.mulf %115, %119 : vector<19x128xf32>
    %121 = arith.subf %114, %120 : vector<19x128xf32>
    %122 = arith.mulf %121, %121 : vector<19x128xf32>
    %cst_25 = arith.constant 1.000000e-01 : f32
    %123 = vector.broadcast %cst_25 : f32 to vector<19x128xf32>
    %124 = arith.addf %123, %122 : vector<19x128xf32>
    %125 = tpu.reciprocal %124 {approx = true} : vector<19x128xf32> -> vector<19x128xf32>
    %126 = vector.extract_strided_slice %125 {offsets = [0, 0], sizes = [16, 128], strides = [1, 1]} : vector<19x128xf32> to vector<16x128xf32>
    %127 = arith.addf %103, %126 : vector<16x128xf32>
    %128 = vector.extract_strided_slice %125 {offsets = [3, 0], sizes = [16, 128], strides = [1, 1]} : vector<19x128xf32> to vector<16x128xf32>
    %129 = arith.addf %106, %128 : vector<16x128xf32>
    %130 = vector.extract_strided_slice %104 {offsets = [1, 0], sizes = [19, 128], strides = [1, 1]} : vector<22x128xf32> to vector<19x128xf32>
    %131 = vector.extract_strided_slice %105 {offsets = [1, 0], sizes = [19, 128], strides = [1, 1]} : vector<22x128xf32> to vector<19x128xf32>
    %132 = arith.subf %130, %4 : vector<19x128xf32>
    %133 = arith.mulf %132, %132 : vector<19x128xf32>
    %cst_26 = arith.constant 8.100000e-01 : f32
    %134 = vector.broadcast %cst_26 : f32 to vector<19x128xf32>
    %135 = arith.addf %134, %133 : vector<19x128xf32>
    %136 = math.rsqrt %135 : vector<19x128xf32>
    %137 = arith.mulf %132, %136 : vector<19x128xf32>
    %138 = arith.subf %131, %5 : vector<19x128xf32>
    %139 = arith.mulf %138, %138 : vector<19x128xf32>
    %cst_27 = arith.constant 8.100000e-01 : f32
    %140 = vector.broadcast %cst_27 : f32 to vector<19x128xf32>
    %141 = arith.addf %140, %139 : vector<19x128xf32>
    %142 = math.rsqrt %141 : vector<19x128xf32>
    %143 = arith.mulf %138, %142 : vector<19x128xf32>
    %144 = arith.subf %137, %143 : vector<19x128xf32>
    %145 = arith.mulf %144, %144 : vector<19x128xf32>
    %cst_28 = arith.constant 1.000000e-01 : f32
    %146 = vector.broadcast %cst_28 : f32 to vector<19x128xf32>
    %147 = arith.addf %146, %145 : vector<19x128xf32>
    %148 = tpu.reciprocal %147 {approx = true} : vector<19x128xf32> -> vector<19x128xf32>
    %149 = vector.extract_strided_slice %148 {offsets = [0, 0], sizes = [16, 128], strides = [1, 1]} : vector<19x128xf32> to vector<16x128xf32>
    %150 = arith.addf %127, %149 : vector<16x128xf32>
    %151 = vector.extract_strided_slice %148 {offsets = [2, 0], sizes = [16, 128], strides = [1, 1]} : vector<19x128xf32> to vector<16x128xf32>
    %152 = arith.addf %129, %151 : vector<16x128xf32>
    %153 = vector.extract_strided_slice %104 {offsets = [2, 0], sizes = [19, 128], strides = [1, 1]} : vector<22x128xf32> to vector<19x128xf32>
    %154 = vector.extract_strided_slice %105 {offsets = [2, 0], sizes = [19, 128], strides = [1, 1]} : vector<22x128xf32> to vector<19x128xf32>
    %155 = arith.subf %153, %4 : vector<19x128xf32>
    %156 = arith.mulf %155, %155 : vector<19x128xf32>
    %cst_29 = arith.constant 8.100000e-01 : f32
    %157 = vector.broadcast %cst_29 : f32 to vector<19x128xf32>
    %158 = arith.addf %157, %156 : vector<19x128xf32>
    %159 = math.rsqrt %158 : vector<19x128xf32>
    %160 = arith.mulf %155, %159 : vector<19x128xf32>
    %161 = arith.subf %154, %5 : vector<19x128xf32>
    %162 = arith.mulf %161, %161 : vector<19x128xf32>
    %cst_30 = arith.constant 8.100000e-01 : f32
    %163 = vector.broadcast %cst_30 : f32 to vector<19x128xf32>
    %164 = arith.addf %163, %162 : vector<19x128xf32>
    %165 = math.rsqrt %164 : vector<19x128xf32>
    %166 = arith.mulf %161, %165 : vector<19x128xf32>
    %167 = arith.subf %160, %166 : vector<19x128xf32>
    %168 = arith.mulf %167, %167 : vector<19x128xf32>
    %cst_31 = arith.constant 1.000000e-01 : f32
    %169 = vector.broadcast %cst_31 : f32 to vector<19x128xf32>
    %170 = arith.addf %169, %168 : vector<19x128xf32>
    %171 = tpu.reciprocal %170 {approx = true} : vector<19x128xf32> -> vector<19x128xf32>
    %172 = vector.extract_strided_slice %171 {offsets = [0, 0], sizes = [16, 128], strides = [1, 1]} : vector<19x128xf32> to vector<16x128xf32>
    %173 = arith.addf %150, %172 : vector<16x128xf32>
    %174 = vector.extract_strided_slice %171 {offsets = [1, 0], sizes = [16, 128], strides = [1, 1]} : vector<19x128xf32> to vector<16x128xf32>
    %175 = arith.addf %152, %174 : vector<16x128xf32>
    %176 = vector.extract_strided_slice %104 {offsets = [3, 0], sizes = [19, 128], strides = [1, 1]} : vector<22x128xf32> to vector<19x128xf32>
    %177 = vector.extract_strided_slice %105 {offsets = [3, 0], sizes = [19, 128], strides = [1, 1]} : vector<22x128xf32> to vector<19x128xf32>
    %178 = arith.subf %176, %4 : vector<19x128xf32>
    %179 = arith.mulf %178, %178 : vector<19x128xf32>
    %cst_32 = arith.constant 8.100000e-01 : f32
    %180 = vector.broadcast %cst_32 : f32 to vector<19x128xf32>
    %181 = arith.addf %180, %179 : vector<19x128xf32>
    %182 = math.rsqrt %181 : vector<19x128xf32>
    %183 = arith.mulf %178, %182 : vector<19x128xf32>
    %184 = arith.subf %177, %5 : vector<19x128xf32>
    %185 = arith.mulf %184, %184 : vector<19x128xf32>
    %cst_33 = arith.constant 8.100000e-01 : f32
    %186 = vector.broadcast %cst_33 : f32 to vector<19x128xf32>
    %187 = arith.addf %186, %185 : vector<19x128xf32>
    %188 = math.rsqrt %187 : vector<19x128xf32>
    %189 = arith.mulf %184, %188 : vector<19x128xf32>
    %190 = arith.subf %183, %189 : vector<19x128xf32>
    %191 = arith.mulf %190, %190 : vector<19x128xf32>
    %cst_34 = arith.constant 1.000000e-01 : f32
    %192 = vector.broadcast %cst_34 : f32 to vector<19x128xf32>
    %193 = arith.addf %192, %191 : vector<19x128xf32>
    %194 = tpu.reciprocal %193 {approx = true} : vector<19x128xf32> -> vector<19x128xf32>
    %195 = vector.extract_strided_slice %194 {offsets = [0, 0], sizes = [16, 128], strides = [1, 1]} : vector<19x128xf32> to vector<16x128xf32>
    %196 = arith.addf %173, %195 : vector<16x128xf32>
    %197 = vector.extract_strided_slice %194 {offsets = [0, 0], sizes = [16, 128], strides = [1, 1]} : vector<19x128xf32> to vector<16x128xf32>
    %198 = arith.addf %175, %197 : vector<16x128xf32>
    %c126_i32 = arith.constant 126 : i32
    %199 = tpu.dynamic_rotate %198 by %c126_i32 dim 1 : vector<16x128xf32>, i32 -> vector<16x128xf32>
    %200 = arith.addf %196, %199 : vector<16x128xf32>
    %c1_i32 = arith.constant 1 : i32
    %201 = tpu.dynamic_rotate %1 by %c1_i32 dim 1 : vector<22x128xf32>, i32 -> vector<22x128xf32>
    %c1_i32_35 = arith.constant 1 : i32
    %202 = tpu.dynamic_rotate %3 by %c1_i32_35 dim 1 : vector<22x128xf32>, i32 -> vector<22x128xf32>
    %cst_36 = arith.constant 0.000000e+00 : f32
    %203 = vector.broadcast %cst_36 : f32 to vector<16x128xf32>
    %204 = vector.extract_strided_slice %201 {offsets = [0, 0], sizes = [19, 128], strides = [1, 1]} : vector<22x128xf32> to vector<19x128xf32>
    %205 = vector.extract_strided_slice %202 {offsets = [0, 0], sizes = [19, 128], strides = [1, 1]} : vector<22x128xf32> to vector<19x128xf32>
    %206 = arith.subf %204, %4 : vector<19x128xf32>
    %207 = arith.mulf %206, %206 : vector<19x128xf32>
    %cst_37 = arith.constant 8.100000e-01 : f32
    %208 = vector.broadcast %cst_37 : f32 to vector<19x128xf32>
    %209 = arith.addf %208, %207 : vector<19x128xf32>
    %210 = math.rsqrt %209 : vector<19x128xf32>
    %211 = arith.mulf %206, %210 : vector<19x128xf32>
    %212 = arith.subf %205, %5 : vector<19x128xf32>
    %213 = arith.mulf %212, %212 : vector<19x128xf32>
    %cst_38 = arith.constant 8.100000e-01 : f32
    %214 = vector.broadcast %cst_38 : f32 to vector<19x128xf32>
    %215 = arith.addf %214, %213 : vector<19x128xf32>
    %216 = math.rsqrt %215 : vector<19x128xf32>
    %217 = arith.mulf %212, %216 : vector<19x128xf32>
    %218 = arith.subf %211, %217 : vector<19x128xf32>
    %219 = arith.mulf %218, %218 : vector<19x128xf32>
    %cst_39 = arith.constant 1.000000e-01 : f32
    %220 = vector.broadcast %cst_39 : f32 to vector<19x128xf32>
    %221 = arith.addf %220, %219 : vector<19x128xf32>
    %222 = tpu.reciprocal %221 {approx = true} : vector<19x128xf32> -> vector<19x128xf32>
    %223 = vector.extract_strided_slice %222 {offsets = [0, 0], sizes = [16, 128], strides = [1, 1]} : vector<19x128xf32> to vector<16x128xf32>
    %224 = arith.addf %200, %223 : vector<16x128xf32>
    %225 = vector.extract_strided_slice %222 {offsets = [3, 0], sizes = [16, 128], strides = [1, 1]} : vector<19x128xf32> to vector<16x128xf32>
    %226 = arith.addf %203, %225 : vector<16x128xf32>
    %227 = vector.extract_strided_slice %201 {offsets = [1, 0], sizes = [19, 128], strides = [1, 1]} : vector<22x128xf32> to vector<19x128xf32>
    %228 = vector.extract_strided_slice %202 {offsets = [1, 0], sizes = [19, 128], strides = [1, 1]} : vector<22x128xf32> to vector<19x128xf32>
    %229 = arith.subf %227, %4 : vector<19x128xf32>
    %230 = arith.mulf %229, %229 : vector<19x128xf32>
    %cst_40 = arith.constant 8.100000e-01 : f32
    %231 = vector.broadcast %cst_40 : f32 to vector<19x128xf32>
    %232 = arith.addf %231, %230 : vector<19x128xf32>
    %233 = math.rsqrt %232 : vector<19x128xf32>
    %234 = arith.mulf %229, %233 : vector<19x128xf32>
    %235 = arith.subf %228, %5 : vector<19x128xf32>
    %236 = arith.mulf %235, %235 : vector<19x128xf32>
    %cst_41 = arith.constant 8.100000e-01 : f32
    %237 = vector.broadcast %cst_41 : f32 to vector<19x128xf32>
    %238 = arith.addf %237, %236 : vector<19x128xf32>
    %239 = math.rsqrt %238 : vector<19x128xf32>
    %240 = arith.mulf %235, %239 : vector<19x128xf32>
    %241 = arith.subf %234, %240 : vector<19x128xf32>
    %242 = arith.mulf %241, %241 : vector<19x128xf32>
    %cst_42 = arith.constant 1.000000e-01 : f32
    %243 = vector.broadcast %cst_42 : f32 to vector<19x128xf32>
    %244 = arith.addf %243, %242 : vector<19x128xf32>
    %245 = tpu.reciprocal %244 {approx = true} : vector<19x128xf32> -> vector<19x128xf32>
    %246 = vector.extract_strided_slice %245 {offsets = [0, 0], sizes = [16, 128], strides = [1, 1]} : vector<19x128xf32> to vector<16x128xf32>
    %247 = arith.addf %224, %246 : vector<16x128xf32>
    %248 = vector.extract_strided_slice %245 {offsets = [2, 0], sizes = [16, 128], strides = [1, 1]} : vector<19x128xf32> to vector<16x128xf32>
    %249 = arith.addf %226, %248 : vector<16x128xf32>
    %250 = vector.extract_strided_slice %201 {offsets = [2, 0], sizes = [19, 128], strides = [1, 1]} : vector<22x128xf32> to vector<19x128xf32>
    %251 = vector.extract_strided_slice %202 {offsets = [2, 0], sizes = [19, 128], strides = [1, 1]} : vector<22x128xf32> to vector<19x128xf32>
    %252 = arith.subf %250, %4 : vector<19x128xf32>
    %253 = arith.mulf %252, %252 : vector<19x128xf32>
    %cst_43 = arith.constant 8.100000e-01 : f32
    %254 = vector.broadcast %cst_43 : f32 to vector<19x128xf32>
    %255 = arith.addf %254, %253 : vector<19x128xf32>
    %256 = math.rsqrt %255 : vector<19x128xf32>
    %257 = arith.mulf %252, %256 : vector<19x128xf32>
    %258 = arith.subf %251, %5 : vector<19x128xf32>
    %259 = arith.mulf %258, %258 : vector<19x128xf32>
    %cst_44 = arith.constant 8.100000e-01 : f32
    %260 = vector.broadcast %cst_44 : f32 to vector<19x128xf32>
    %261 = arith.addf %260, %259 : vector<19x128xf32>
    %262 = math.rsqrt %261 : vector<19x128xf32>
    %263 = arith.mulf %258, %262 : vector<19x128xf32>
    %264 = arith.subf %257, %263 : vector<19x128xf32>
    %265 = arith.mulf %264, %264 : vector<19x128xf32>
    %cst_45 = arith.constant 1.000000e-01 : f32
    %266 = vector.broadcast %cst_45 : f32 to vector<19x128xf32>
    %267 = arith.addf %266, %265 : vector<19x128xf32>
    %268 = tpu.reciprocal %267 {approx = true} : vector<19x128xf32> -> vector<19x128xf32>
    %269 = vector.extract_strided_slice %268 {offsets = [0, 0], sizes = [16, 128], strides = [1, 1]} : vector<19x128xf32> to vector<16x128xf32>
    %270 = arith.addf %247, %269 : vector<16x128xf32>
    %271 = vector.extract_strided_slice %268 {offsets = [1, 0], sizes = [16, 128], strides = [1, 1]} : vector<19x128xf32> to vector<16x128xf32>
    %272 = arith.addf %249, %271 : vector<16x128xf32>
    %273 = vector.extract_strided_slice %201 {offsets = [3, 0], sizes = [19, 128], strides = [1, 1]} : vector<22x128xf32> to vector<19x128xf32>
    %274 = vector.extract_strided_slice %202 {offsets = [3, 0], sizes = [19, 128], strides = [1, 1]} : vector<22x128xf32> to vector<19x128xf32>
    %275 = arith.subf %273, %4 : vector<19x128xf32>
    %276 = arith.mulf %275, %275 : vector<19x128xf32>
    %cst_46 = arith.constant 8.100000e-01 : f32
    %277 = vector.broadcast %cst_46 : f32 to vector<19x128xf32>
    %278 = arith.addf %277, %276 : vector<19x128xf32>
    %279 = math.rsqrt %278 : vector<19x128xf32>
    %280 = arith.mulf %275, %279 : vector<19x128xf32>
    %281 = arith.subf %274, %5 : vector<19x128xf32>
    %282 = arith.mulf %281, %281 : vector<19x128xf32>
    %cst_47 = arith.constant 8.100000e-01 : f32
    %283 = vector.broadcast %cst_47 : f32 to vector<19x128xf32>
    %284 = arith.addf %283, %282 : vector<19x128xf32>
    %285 = math.rsqrt %284 : vector<19x128xf32>
    %286 = arith.mulf %281, %285 : vector<19x128xf32>
    %287 = arith.subf %280, %286 : vector<19x128xf32>
    %288 = arith.mulf %287, %287 : vector<19x128xf32>
    %cst_48 = arith.constant 1.000000e-01 : f32
    %289 = vector.broadcast %cst_48 : f32 to vector<19x128xf32>
    %290 = arith.addf %289, %288 : vector<19x128xf32>
    %291 = tpu.reciprocal %290 {approx = true} : vector<19x128xf32> -> vector<19x128xf32>
    %292 = vector.extract_strided_slice %291 {offsets = [0, 0], sizes = [16, 128], strides = [1, 1]} : vector<19x128xf32> to vector<16x128xf32>
    %293 = arith.addf %270, %292 : vector<16x128xf32>
    %294 = vector.extract_strided_slice %291 {offsets = [0, 0], sizes = [16, 128], strides = [1, 1]} : vector<19x128xf32> to vector<16x128xf32>
    %295 = arith.addf %272, %294 : vector<16x128xf32>
    %c127_i32 = arith.constant 127 : i32
    %296 = tpu.dynamic_rotate %295 by %c127_i32 dim 1 : vector<16x128xf32>, i32 -> vector<16x128xf32>
    %297 = arith.addf %293, %296 : vector<16x128xf32>
    %cst_49 = arith.constant 0.000000e+00 : f32
    %298 = vector.broadcast %cst_49 : f32 to vector<16x128xf32>
    %299 = vector.extract_strided_slice %1 {offsets = [0, 0], sizes = [19, 128], strides = [1, 1]} : vector<22x128xf32> to vector<19x128xf32>
    %300 = vector.extract_strided_slice %3 {offsets = [0, 0], sizes = [19, 128], strides = [1, 1]} : vector<22x128xf32> to vector<19x128xf32>
    %301 = arith.subf %299, %4 : vector<19x128xf32>
    %302 = arith.mulf %301, %301 : vector<19x128xf32>
    %cst_50 = arith.constant 8.100000e-01 : f32
    %303 = vector.broadcast %cst_50 : f32 to vector<19x128xf32>
    %304 = arith.addf %303, %302 : vector<19x128xf32>
    %305 = math.rsqrt %304 : vector<19x128xf32>
    %306 = arith.mulf %301, %305 : vector<19x128xf32>
    %307 = arith.subf %300, %5 : vector<19x128xf32>
    %308 = arith.mulf %307, %307 : vector<19x128xf32>
    %cst_51 = arith.constant 8.100000e-01 : f32
    %309 = vector.broadcast %cst_51 : f32 to vector<19x128xf32>
    %310 = arith.addf %309, %308 : vector<19x128xf32>
    %311 = math.rsqrt %310 : vector<19x128xf32>
    %312 = arith.mulf %307, %311 : vector<19x128xf32>
    %313 = arith.subf %306, %312 : vector<19x128xf32>
    %314 = arith.mulf %313, %313 : vector<19x128xf32>
    %cst_52 = arith.constant 1.000000e-01 : f32
    %315 = vector.broadcast %cst_52 : f32 to vector<19x128xf32>
    %316 = arith.addf %315, %314 : vector<19x128xf32>
    %317 = tpu.reciprocal %316 {approx = true} : vector<19x128xf32> -> vector<19x128xf32>
    %318 = vector.extract_strided_slice %317 {offsets = [0, 0], sizes = [16, 128], strides = [1, 1]} : vector<19x128xf32> to vector<16x128xf32>
    %319 = arith.addf %297, %318 : vector<16x128xf32>
    %320 = vector.extract_strided_slice %317 {offsets = [3, 0], sizes = [16, 128], strides = [1, 1]} : vector<19x128xf32> to vector<16x128xf32>
    %321 = arith.addf %298, %320 : vector<16x128xf32>
    %322 = vector.extract_strided_slice %1 {offsets = [1, 0], sizes = [19, 128], strides = [1, 1]} : vector<22x128xf32> to vector<19x128xf32>
    %323 = vector.extract_strided_slice %3 {offsets = [1, 0], sizes = [19, 128], strides = [1, 1]} : vector<22x128xf32> to vector<19x128xf32>
    %324 = arith.subf %322, %4 : vector<19x128xf32>
    %325 = arith.mulf %324, %324 : vector<19x128xf32>
    %cst_53 = arith.constant 8.100000e-01 : f32
    %326 = vector.broadcast %cst_53 : f32 to vector<19x128xf32>
    %327 = arith.addf %326, %325 : vector<19x128xf32>
    %328 = math.rsqrt %327 : vector<19x128xf32>
    %329 = arith.mulf %324, %328 : vector<19x128xf32>
    %330 = arith.subf %323, %5 : vector<19x128xf32>
    %331 = arith.mulf %330, %330 : vector<19x128xf32>
    %cst_54 = arith.constant 8.100000e-01 : f32
    %332 = vector.broadcast %cst_54 : f32 to vector<19x128xf32>
    %333 = arith.addf %332, %331 : vector<19x128xf32>
    %334 = math.rsqrt %333 : vector<19x128xf32>
    %335 = arith.mulf %330, %334 : vector<19x128xf32>
    %336 = arith.subf %329, %335 : vector<19x128xf32>
    %337 = arith.mulf %336, %336 : vector<19x128xf32>
    %cst_55 = arith.constant 1.000000e-01 : f32
    %338 = vector.broadcast %cst_55 : f32 to vector<19x128xf32>
    %339 = arith.addf %338, %337 : vector<19x128xf32>
    %340 = tpu.reciprocal %339 {approx = true} : vector<19x128xf32> -> vector<19x128xf32>
    %341 = vector.extract_strided_slice %340 {offsets = [0, 0], sizes = [16, 128], strides = [1, 1]} : vector<19x128xf32> to vector<16x128xf32>
    %342 = arith.addf %319, %341 : vector<16x128xf32>
    %343 = vector.extract_strided_slice %340 {offsets = [2, 0], sizes = [16, 128], strides = [1, 1]} : vector<19x128xf32> to vector<16x128xf32>
    %344 = arith.addf %321, %343 : vector<16x128xf32>
    %345 = vector.extract_strided_slice %1 {offsets = [2, 0], sizes = [19, 128], strides = [1, 1]} : vector<22x128xf32> to vector<19x128xf32>
    %346 = vector.extract_strided_slice %3 {offsets = [2, 0], sizes = [19, 128], strides = [1, 1]} : vector<22x128xf32> to vector<19x128xf32>
    %347 = arith.subf %345, %4 : vector<19x128xf32>
    %348 = arith.mulf %347, %347 : vector<19x128xf32>
    %cst_56 = arith.constant 8.100000e-01 : f32
    %349 = vector.broadcast %cst_56 : f32 to vector<19x128xf32>
    %350 = arith.addf %349, %348 : vector<19x128xf32>
    %351 = math.rsqrt %350 : vector<19x128xf32>
    %352 = arith.mulf %347, %351 : vector<19x128xf32>
    %353 = arith.subf %346, %5 : vector<19x128xf32>
    %354 = arith.mulf %353, %353 : vector<19x128xf32>
    %cst_57 = arith.constant 8.100000e-01 : f32
    %355 = vector.broadcast %cst_57 : f32 to vector<19x128xf32>
    %356 = arith.addf %355, %354 : vector<19x128xf32>
    %357 = math.rsqrt %356 : vector<19x128xf32>
    %358 = arith.mulf %353, %357 : vector<19x128xf32>
    %359 = arith.subf %352, %358 : vector<19x128xf32>
    %360 = arith.mulf %359, %359 : vector<19x128xf32>
    %cst_58 = arith.constant 1.000000e-01 : f32
    %361 = vector.broadcast %cst_58 : f32 to vector<19x128xf32>
    %362 = arith.addf %361, %360 : vector<19x128xf32>
    %363 = tpu.reciprocal %362 {approx = true} : vector<19x128xf32> -> vector<19x128xf32>
    %364 = vector.extract_strided_slice %363 {offsets = [0, 0], sizes = [16, 128], strides = [1, 1]} : vector<19x128xf32> to vector<16x128xf32>
    %365 = arith.addf %342, %364 : vector<16x128xf32>
    %366 = vector.extract_strided_slice %363 {offsets = [1, 0], sizes = [16, 128], strides = [1, 1]} : vector<19x128xf32> to vector<16x128xf32>
    %367 = arith.addf %344, %366 : vector<16x128xf32>
    %368 = arith.addf %365, %367 : vector<16x128xf32>
    %c127_i32_59 = arith.constant 127 : i32
    %369 = tpu.dynamic_rotate %1 by %c127_i32_59 dim 1 : vector<22x128xf32>, i32 -> vector<22x128xf32>
    %c127_i32_60 = arith.constant 127 : i32
    %370 = tpu.dynamic_rotate %3 by %c127_i32_60 dim 1 : vector<22x128xf32>, i32 -> vector<22x128xf32>
    %cst_61 = arith.constant 0.000000e+00 : f32
    %371 = vector.broadcast %cst_61 : f32 to vector<16x128xf32>
    %372 = vector.extract_strided_slice %369 {offsets = [0, 0], sizes = [19, 128], strides = [1, 1]} : vector<22x128xf32> to vector<19x128xf32>
    %373 = vector.extract_strided_slice %370 {offsets = [0, 0], sizes = [19, 128], strides = [1, 1]} : vector<22x128xf32> to vector<19x128xf32>
    %374 = arith.subf %372, %4 : vector<19x128xf32>
    %375 = arith.mulf %374, %374 : vector<19x128xf32>
    %cst_62 = arith.constant 8.100000e-01 : f32
    %376 = vector.broadcast %cst_62 : f32 to vector<19x128xf32>
    %377 = arith.addf %376, %375 : vector<19x128xf32>
    %378 = math.rsqrt %377 : vector<19x128xf32>
    %379 = arith.mulf %374, %378 : vector<19x128xf32>
    %380 = arith.subf %373, %5 : vector<19x128xf32>
    %381 = arith.mulf %380, %380 : vector<19x128xf32>
    %cst_63 = arith.constant 8.100000e-01 : f32
    %382 = vector.broadcast %cst_63 : f32 to vector<19x128xf32>
    %383 = arith.addf %382, %381 : vector<19x128xf32>
    %384 = math.rsqrt %383 : vector<19x128xf32>
    %385 = arith.mulf %380, %384 : vector<19x128xf32>
    %386 = arith.subf %379, %385 : vector<19x128xf32>
    %387 = arith.mulf %386, %386 : vector<19x128xf32>
    %cst_64 = arith.constant 1.000000e-01 : f32
    %388 = vector.broadcast %cst_64 : f32 to vector<19x128xf32>
    %389 = arith.addf %388, %387 : vector<19x128xf32>
    %390 = tpu.reciprocal %389 {approx = true} : vector<19x128xf32> -> vector<19x128xf32>
    %391 = vector.extract_strided_slice %390 {offsets = [0, 0], sizes = [16, 128], strides = [1, 1]} : vector<19x128xf32> to vector<16x128xf32>
    %392 = arith.addf %368, %391 : vector<16x128xf32>
    %393 = vector.extract_strided_slice %390 {offsets = [3, 0], sizes = [16, 128], strides = [1, 1]} : vector<19x128xf32> to vector<16x128xf32>
    %394 = arith.addf %371, %393 : vector<16x128xf32>
    %395 = vector.extract_strided_slice %369 {offsets = [1, 0], sizes = [19, 128], strides = [1, 1]} : vector<22x128xf32> to vector<19x128xf32>
    %396 = vector.extract_strided_slice %370 {offsets = [1, 0], sizes = [19, 128], strides = [1, 1]} : vector<22x128xf32> to vector<19x128xf32>
    %397 = arith.subf %395, %4 : vector<19x128xf32>
    %398 = arith.mulf %397, %397 : vector<19x128xf32>
    %cst_65 = arith.constant 8.100000e-01 : f32
    %399 = vector.broadcast %cst_65 : f32 to vector<19x128xf32>
    %400 = arith.addf %399, %398 : vector<19x128xf32>
    %401 = math.rsqrt %400 : vector<19x128xf32>
    %402 = arith.mulf %397, %401 : vector<19x128xf32>
    %403 = arith.subf %396, %5 : vector<19x128xf32>
    %404 = arith.mulf %403, %403 : vector<19x128xf32>
    %cst_66 = arith.constant 8.100000e-01 : f32
    %405 = vector.broadcast %cst_66 : f32 to vector<19x128xf32>
    %406 = arith.addf %405, %404 : vector<19x128xf32>
    %407 = math.rsqrt %406 : vector<19x128xf32>
    %408 = arith.mulf %403, %407 : vector<19x128xf32>
    %409 = arith.subf %402, %408 : vector<19x128xf32>
    %410 = arith.mulf %409, %409 : vector<19x128xf32>
    %cst_67 = arith.constant 1.000000e-01 : f32
    %411 = vector.broadcast %cst_67 : f32 to vector<19x128xf32>
    %412 = arith.addf %411, %410 : vector<19x128xf32>
    %413 = tpu.reciprocal %412 {approx = true} : vector<19x128xf32> -> vector<19x128xf32>
    %414 = vector.extract_strided_slice %413 {offsets = [0, 0], sizes = [16, 128], strides = [1, 1]} : vector<19x128xf32> to vector<16x128xf32>
    %415 = arith.addf %392, %414 : vector<16x128xf32>
    %416 = vector.extract_strided_slice %413 {offsets = [2, 0], sizes = [16, 128], strides = [1, 1]} : vector<19x128xf32> to vector<16x128xf32>
    %417 = arith.addf %394, %416 : vector<16x128xf32>
    %418 = vector.extract_strided_slice %369 {offsets = [2, 0], sizes = [19, 128], strides = [1, 1]} : vector<22x128xf32> to vector<19x128xf32>
    %419 = vector.extract_strided_slice %370 {offsets = [2, 0], sizes = [19, 128], strides = [1, 1]} : vector<22x128xf32> to vector<19x128xf32>
    %420 = arith.subf %418, %4 : vector<19x128xf32>
    %421 = arith.mulf %420, %420 : vector<19x128xf32>
    %cst_68 = arith.constant 8.100000e-01 : f32
    %422 = vector.broadcast %cst_68 : f32 to vector<19x128xf32>
    %423 = arith.addf %422, %421 : vector<19x128xf32>
    %424 = math.rsqrt %423 : vector<19x128xf32>
    %425 = arith.mulf %420, %424 : vector<19x128xf32>
    %426 = arith.subf %419, %5 : vector<19x128xf32>
    %427 = arith.mulf %426, %426 : vector<19x128xf32>
    %cst_69 = arith.constant 8.100000e-01 : f32
    %428 = vector.broadcast %cst_69 : f32 to vector<19x128xf32>
    %429 = arith.addf %428, %427 : vector<19x128xf32>
    %430 = math.rsqrt %429 : vector<19x128xf32>
    %431 = arith.mulf %426, %430 : vector<19x128xf32>
    %432 = arith.subf %425, %431 : vector<19x128xf32>
    %433 = arith.mulf %432, %432 : vector<19x128xf32>
    %cst_70 = arith.constant 1.000000e-01 : f32
    %434 = vector.broadcast %cst_70 : f32 to vector<19x128xf32>
    %435 = arith.addf %434, %433 : vector<19x128xf32>
    %436 = tpu.reciprocal %435 {approx = true} : vector<19x128xf32> -> vector<19x128xf32>
    %437 = vector.extract_strided_slice %436 {offsets = [0, 0], sizes = [16, 128], strides = [1, 1]} : vector<19x128xf32> to vector<16x128xf32>
    %438 = arith.addf %415, %437 : vector<16x128xf32>
    %439 = vector.extract_strided_slice %436 {offsets = [1, 0], sizes = [16, 128], strides = [1, 1]} : vector<19x128xf32> to vector<16x128xf32>
    %440 = arith.addf %417, %439 : vector<16x128xf32>
    %c1_i32_71 = arith.constant 1 : i32
    %441 = tpu.dynamic_rotate %440 by %c1_i32_71 dim 1 : vector<16x128xf32>, i32 -> vector<16x128xf32>
    %442 = arith.addf %438, %441 : vector<16x128xf32>
    %c126_i32_72 = arith.constant 126 : i32
    %443 = tpu.dynamic_rotate %1 by %c126_i32_72 dim 1 : vector<22x128xf32>, i32 -> vector<22x128xf32>
    %c126_i32_73 = arith.constant 126 : i32
    %444 = tpu.dynamic_rotate %3 by %c126_i32_73 dim 1 : vector<22x128xf32>, i32 -> vector<22x128xf32>
    %cst_74 = arith.constant 0.000000e+00 : f32
    %445 = vector.broadcast %cst_74 : f32 to vector<16x128xf32>
    %446 = vector.extract_strided_slice %443 {offsets = [0, 0], sizes = [19, 128], strides = [1, 1]} : vector<22x128xf32> to vector<19x128xf32>
    %447 = vector.extract_strided_slice %444 {offsets = [0, 0], sizes = [19, 128], strides = [1, 1]} : vector<22x128xf32> to vector<19x128xf32>
    %448 = arith.subf %446, %4 : vector<19x128xf32>
    %449 = arith.mulf %448, %448 : vector<19x128xf32>
    %cst_75 = arith.constant 8.100000e-01 : f32
    %450 = vector.broadcast %cst_75 : f32 to vector<19x128xf32>
    %451 = arith.addf %450, %449 : vector<19x128xf32>
    %452 = math.rsqrt %451 : vector<19x128xf32>
    %453 = arith.mulf %448, %452 : vector<19x128xf32>
    %454 = arith.subf %447, %5 : vector<19x128xf32>
    %455 = arith.mulf %454, %454 : vector<19x128xf32>
    %cst_76 = arith.constant 8.100000e-01 : f32
    %456 = vector.broadcast %cst_76 : f32 to vector<19x128xf32>
    %457 = arith.addf %456, %455 : vector<19x128xf32>
    %458 = math.rsqrt %457 : vector<19x128xf32>
    %459 = arith.mulf %454, %458 : vector<19x128xf32>
    %460 = arith.subf %453, %459 : vector<19x128xf32>
    %461 = arith.mulf %460, %460 : vector<19x128xf32>
    %cst_77 = arith.constant 1.000000e-01 : f32
    %462 = vector.broadcast %cst_77 : f32 to vector<19x128xf32>
    %463 = arith.addf %462, %461 : vector<19x128xf32>
    %464 = tpu.reciprocal %463 {approx = true} : vector<19x128xf32> -> vector<19x128xf32>
    %465 = vector.extract_strided_slice %464 {offsets = [0, 0], sizes = [16, 128], strides = [1, 1]} : vector<19x128xf32> to vector<16x128xf32>
    %466 = arith.addf %442, %465 : vector<16x128xf32>
    %467 = vector.extract_strided_slice %464 {offsets = [3, 0], sizes = [16, 128], strides = [1, 1]} : vector<19x128xf32> to vector<16x128xf32>
    %468 = arith.addf %445, %467 : vector<16x128xf32>
    %469 = vector.extract_strided_slice %443 {offsets = [1, 0], sizes = [19, 128], strides = [1, 1]} : vector<22x128xf32> to vector<19x128xf32>
    %470 = vector.extract_strided_slice %444 {offsets = [1, 0], sizes = [19, 128], strides = [1, 1]} : vector<22x128xf32> to vector<19x128xf32>
    %471 = arith.subf %469, %4 : vector<19x128xf32>
    %472 = arith.mulf %471, %471 : vector<19x128xf32>
    %cst_78 = arith.constant 8.100000e-01 : f32
    %473 = vector.broadcast %cst_78 : f32 to vector<19x128xf32>
    %474 = arith.addf %473, %472 : vector<19x128xf32>
    %475 = math.rsqrt %474 : vector<19x128xf32>
    %476 = arith.mulf %471, %475 : vector<19x128xf32>
    %477 = arith.subf %470, %5 : vector<19x128xf32>
    %478 = arith.mulf %477, %477 : vector<19x128xf32>
    %cst_79 = arith.constant 8.100000e-01 : f32
    %479 = vector.broadcast %cst_79 : f32 to vector<19x128xf32>
    %480 = arith.addf %479, %478 : vector<19x128xf32>
    %481 = math.rsqrt %480 : vector<19x128xf32>
    %482 = arith.mulf %477, %481 : vector<19x128xf32>
    %483 = arith.subf %476, %482 : vector<19x128xf32>
    %484 = arith.mulf %483, %483 : vector<19x128xf32>
    %cst_80 = arith.constant 1.000000e-01 : f32
    %485 = vector.broadcast %cst_80 : f32 to vector<19x128xf32>
    %486 = arith.addf %485, %484 : vector<19x128xf32>
    %487 = tpu.reciprocal %486 {approx = true} : vector<19x128xf32> -> vector<19x128xf32>
    %488 = vector.extract_strided_slice %487 {offsets = [0, 0], sizes = [16, 128], strides = [1, 1]} : vector<19x128xf32> to vector<16x128xf32>
    %489 = arith.addf %466, %488 : vector<16x128xf32>
    %490 = vector.extract_strided_slice %487 {offsets = [2, 0], sizes = [16, 128], strides = [1, 1]} : vector<19x128xf32> to vector<16x128xf32>
    %491 = arith.addf %468, %490 : vector<16x128xf32>
    %492 = vector.extract_strided_slice %443 {offsets = [2, 0], sizes = [19, 128], strides = [1, 1]} : vector<22x128xf32> to vector<19x128xf32>
    %493 = vector.extract_strided_slice %444 {offsets = [2, 0], sizes = [19, 128], strides = [1, 1]} : vector<22x128xf32> to vector<19x128xf32>
    %494 = arith.subf %492, %4 : vector<19x128xf32>
    %495 = arith.mulf %494, %494 : vector<19x128xf32>
    %cst_81 = arith.constant 8.100000e-01 : f32
    %496 = vector.broadcast %cst_81 : f32 to vector<19x128xf32>
    %497 = arith.addf %496, %495 : vector<19x128xf32>
    %498 = math.rsqrt %497 : vector<19x128xf32>
    %499 = arith.mulf %494, %498 : vector<19x128xf32>
    %500 = arith.subf %493, %5 : vector<19x128xf32>
    %501 = arith.mulf %500, %500 : vector<19x128xf32>
    %cst_82 = arith.constant 8.100000e-01 : f32
    %502 = vector.broadcast %cst_82 : f32 to vector<19x128xf32>
    %503 = arith.addf %502, %501 : vector<19x128xf32>
    %504 = math.rsqrt %503 : vector<19x128xf32>
    %505 = arith.mulf %500, %504 : vector<19x128xf32>
    %506 = arith.subf %499, %505 : vector<19x128xf32>
    %507 = arith.mulf %506, %506 : vector<19x128xf32>
    %cst_83 = arith.constant 1.000000e-01 : f32
    %508 = vector.broadcast %cst_83 : f32 to vector<19x128xf32>
    %509 = arith.addf %508, %507 : vector<19x128xf32>
    %510 = tpu.reciprocal %509 {approx = true} : vector<19x128xf32> -> vector<19x128xf32>
    %511 = vector.extract_strided_slice %510 {offsets = [0, 0], sizes = [16, 128], strides = [1, 1]} : vector<19x128xf32> to vector<16x128xf32>
    %512 = arith.addf %489, %511 : vector<16x128xf32>
    %513 = vector.extract_strided_slice %510 {offsets = [1, 0], sizes = [16, 128], strides = [1, 1]} : vector<19x128xf32> to vector<16x128xf32>
    %514 = arith.addf %491, %513 : vector<16x128xf32>
    %c2_i32_84 = arith.constant 2 : i32
    %515 = tpu.dynamic_rotate %514 by %c2_i32_84 dim 1 : vector<16x128xf32>, i32 -> vector<16x128xf32>
    %516 = arith.addf %512, %515 : vector<16x128xf32>
    %c125_i32_85 = arith.constant 125 : i32
    %517 = tpu.dynamic_rotate %1 by %c125_i32_85 dim 1 : vector<22x128xf32>, i32 -> vector<22x128xf32>
    %c125_i32_86 = arith.constant 125 : i32
    %518 = tpu.dynamic_rotate %3 by %c125_i32_86 dim 1 : vector<22x128xf32>, i32 -> vector<22x128xf32>
    %cst_87 = arith.constant 0.000000e+00 : f32
    %519 = vector.broadcast %cst_87 : f32 to vector<16x128xf32>
    %520 = vector.extract_strided_slice %517 {offsets = [0, 0], sizes = [19, 128], strides = [1, 1]} : vector<22x128xf32> to vector<19x128xf32>
    %521 = vector.extract_strided_slice %518 {offsets = [0, 0], sizes = [19, 128], strides = [1, 1]} : vector<22x128xf32> to vector<19x128xf32>
    %522 = arith.subf %520, %4 : vector<19x128xf32>
    %523 = arith.mulf %522, %522 : vector<19x128xf32>
    %cst_88 = arith.constant 8.100000e-01 : f32
    %524 = vector.broadcast %cst_88 : f32 to vector<19x128xf32>
    %525 = arith.addf %524, %523 : vector<19x128xf32>
    %526 = math.rsqrt %525 : vector<19x128xf32>
    %527 = arith.mulf %522, %526 : vector<19x128xf32>
    %528 = arith.subf %521, %5 : vector<19x128xf32>
    %529 = arith.mulf %528, %528 : vector<19x128xf32>
    %cst_89 = arith.constant 8.100000e-01 : f32
    %530 = vector.broadcast %cst_89 : f32 to vector<19x128xf32>
    %531 = arith.addf %530, %529 : vector<19x128xf32>
    %532 = math.rsqrt %531 : vector<19x128xf32>
    %533 = arith.mulf %528, %532 : vector<19x128xf32>
    %534 = arith.subf %527, %533 : vector<19x128xf32>
    %535 = arith.mulf %534, %534 : vector<19x128xf32>
    %cst_90 = arith.constant 1.000000e-01 : f32
    %536 = vector.broadcast %cst_90 : f32 to vector<19x128xf32>
    %537 = arith.addf %536, %535 : vector<19x128xf32>
    %538 = tpu.reciprocal %537 {approx = true} : vector<19x128xf32> -> vector<19x128xf32>
    %539 = vector.extract_strided_slice %538 {offsets = [0, 0], sizes = [16, 128], strides = [1, 1]} : vector<19x128xf32> to vector<16x128xf32>
    %540 = arith.addf %516, %539 : vector<16x128xf32>
    %541 = vector.extract_strided_slice %538 {offsets = [3, 0], sizes = [16, 128], strides = [1, 1]} : vector<19x128xf32> to vector<16x128xf32>
    %542 = arith.addf %519, %541 : vector<16x128xf32>
    %543 = vector.extract_strided_slice %517 {offsets = [1, 0], sizes = [19, 128], strides = [1, 1]} : vector<22x128xf32> to vector<19x128xf32>
    %544 = vector.extract_strided_slice %518 {offsets = [1, 0], sizes = [19, 128], strides = [1, 1]} : vector<22x128xf32> to vector<19x128xf32>
    %545 = arith.subf %543, %4 : vector<19x128xf32>
    %546 = arith.mulf %545, %545 : vector<19x128xf32>
    %cst_91 = arith.constant 8.100000e-01 : f32
    %547 = vector.broadcast %cst_91 : f32 to vector<19x128xf32>
    %548 = arith.addf %547, %546 : vector<19x128xf32>
    %549 = math.rsqrt %548 : vector<19x128xf32>
    %550 = arith.mulf %545, %549 : vector<19x128xf32>
    %551 = arith.subf %544, %5 : vector<19x128xf32>
    %552 = arith.mulf %551, %551 : vector<19x128xf32>
    %cst_92 = arith.constant 8.100000e-01 : f32
    %553 = vector.broadcast %cst_92 : f32 to vector<19x128xf32>
    %554 = arith.addf %553, %552 : vector<19x128xf32>
    %555 = math.rsqrt %554 : vector<19x128xf32>
    %556 = arith.mulf %551, %555 : vector<19x128xf32>
    %557 = arith.subf %550, %556 : vector<19x128xf32>
    %558 = arith.mulf %557, %557 : vector<19x128xf32>
    %cst_93 = arith.constant 1.000000e-01 : f32
    %559 = vector.broadcast %cst_93 : f32 to vector<19x128xf32>
    %560 = arith.addf %559, %558 : vector<19x128xf32>
    %561 = tpu.reciprocal %560 {approx = true} : vector<19x128xf32> -> vector<19x128xf32>
    %562 = vector.extract_strided_slice %561 {offsets = [0, 0], sizes = [16, 128], strides = [1, 1]} : vector<19x128xf32> to vector<16x128xf32>
    %563 = arith.addf %540, %562 : vector<16x128xf32>
    %564 = vector.extract_strided_slice %561 {offsets = [2, 0], sizes = [16, 128], strides = [1, 1]} : vector<19x128xf32> to vector<16x128xf32>
    %565 = arith.addf %542, %564 : vector<16x128xf32>
    %566 = vector.extract_strided_slice %517 {offsets = [2, 0], sizes = [19, 128], strides = [1, 1]} : vector<22x128xf32> to vector<19x128xf32>
    %567 = vector.extract_strided_slice %518 {offsets = [2, 0], sizes = [19, 128], strides = [1, 1]} : vector<22x128xf32> to vector<19x128xf32>
    %568 = arith.subf %566, %4 : vector<19x128xf32>
    %569 = arith.mulf %568, %568 : vector<19x128xf32>
    %cst_94 = arith.constant 8.100000e-01 : f32
    %570 = vector.broadcast %cst_94 : f32 to vector<19x128xf32>
    %571 = arith.addf %570, %569 : vector<19x128xf32>
    %572 = math.rsqrt %571 : vector<19x128xf32>
    %573 = arith.mulf %568, %572 : vector<19x128xf32>
    %574 = arith.subf %567, %5 : vector<19x128xf32>
    %575 = arith.mulf %574, %574 : vector<19x128xf32>
    %cst_95 = arith.constant 8.100000e-01 : f32
    %576 = vector.broadcast %cst_95 : f32 to vector<19x128xf32>
    %577 = arith.addf %576, %575 : vector<19x128xf32>
    %578 = math.rsqrt %577 : vector<19x128xf32>
    %579 = arith.mulf %574, %578 : vector<19x128xf32>
    %580 = arith.subf %573, %579 : vector<19x128xf32>
    %581 = arith.mulf %580, %580 : vector<19x128xf32>
    %cst_96 = arith.constant 1.000000e-01 : f32
    %582 = vector.broadcast %cst_96 : f32 to vector<19x128xf32>
    %583 = arith.addf %582, %581 : vector<19x128xf32>
    %584 = tpu.reciprocal %583 {approx = true} : vector<19x128xf32> -> vector<19x128xf32>
    %585 = vector.extract_strided_slice %584 {offsets = [0, 0], sizes = [16, 128], strides = [1, 1]} : vector<19x128xf32> to vector<16x128xf32>
    %586 = arith.addf %563, %585 : vector<16x128xf32>
    %587 = vector.extract_strided_slice %584 {offsets = [1, 0], sizes = [16, 128], strides = [1, 1]} : vector<19x128xf32> to vector<16x128xf32>
    %588 = arith.addf %565, %587 : vector<16x128xf32>
    %c3_i32_97 = arith.constant 3 : i32
    %589 = tpu.dynamic_rotate %588 by %c3_i32_97 dim 1 : vector<16x128xf32>, i32 -> vector<16x128xf32>
    %590 = arith.addf %586, %589 : vector<16x128xf32>
    %c125_i32_98 = arith.constant 125 : i32
    %591 = tpu.dynamic_rotate %590 by %c125_i32_98 dim 1 : vector<16x128xf32>, i32 -> vector<16x128xf32>
    %cst_99 = arith.constant 0.00204081624 : f32
    %592 = vector.broadcast %cst_99 : f32 to vector<16x128xf32>
    %593 = arith.mulf %592, %591 : vector<16x128xf32>
    %cst_100 = arith.constant 0.979591846 : f32
    %594 = vector.broadcast %cst_100 : f32 to vector<16x128xf32>
    %595 = arith.subf %594, %593 : vector<16x128xf32>
    %596 = tpu.iota {dimensions = array<i32: 0>} : vector<16x128xi32>
    %c16_i32 = arith.constant 16 : i32
    %597 = arith.muli %arg1, %c16_i32 : i32
    %598 = vector.broadcast %597 : i32 to vector<16x128xi32>
    %599 = arith.addi %596, %598 : vector<16x128xi32>
    %600 = tpu.iota {dimensions = array<i32: 1>} : vector<16x128xi32>
    %c1_i32_101 = arith.constant 1 : i32
    %601 = vector.broadcast %c1_i32_101 : i32 to vector<16x128xi32>
    %602 = arith.cmpi sge, %599, %601 : vector<16x128xi32>
    %c15_i32 = arith.constant 15 : i32
    %603 = vector.broadcast %c15_i32 : i32 to vector<16x128xi32>
    %604 = arith.cmpi slt, %599, %603 : vector<16x128xi32>
    %605 = arith.andi %602, %604 : vector<16x128xi1>
    %c1_i32_102 = arith.constant 1 : i32
    %606 = vector.broadcast %c1_i32_102 : i32 to vector<16x128xi32>
    %607 = arith.cmpi sge, %600, %606 : vector<16x128xi32>
    %608 = arith.andi %605, %607 : vector<16x128xi1>
    %c15_i32_103 = arith.constant 15 : i32
    %609 = vector.broadcast %c15_i32_103 : i32 to vector<16x128xi32>
    %610 = arith.cmpi slt, %600, %609 : vector<16x128xi32>
    %611 = arith.andi %608, %610 : vector<16x128xi1>
    %612 = arith.extui %611 : vector<16x128xi1> to vector<16x128xi32>
    %613 = arith.sitofp %612 : vector<16x128xi32> to vector<16x128xf32>
    %614 = arith.mulf %595, %613 : vector<16x128xf32>
    %c0_104 = arith.constant 0 : index
    %c0_105 = arith.constant 0 : index
    %c0_106 = arith.constant 0 : index
    %c0_107 = arith.constant 0 : index
    %615 = vector.load %arg4[%c0_104, %c0_105, %c0_106, %c0_107] : memref<1x1x16x128xf32, #tpu.memory_space<vmem>>, vector<1x1x16x128xf32>
    %616 = vector.shape_cast %615 : vector<1x1x16x128xf32> to vector<16x128xf32>
    %617 = vector.shape_cast %614 : vector<16x128xf32> to vector<1x1x16x128xf32>
    tpu.vector_store %arg4[%c0_104, %c0_105, %c0_106, %c0_107], %617 {strides = array<i32>} : memref<1x1x16x128xf32, #tpu.memory_space<vmem>>, vector<1x1x16x128xf32>,
    return
  }
  func.func @transform_0(%arg0: i32, %arg1: i32) -> (i32, i32, i32, i32) {
    %c0_i32 = arith.constant 0 : i32
    %c0_i32_0 = arith.constant 0 : i32
    %c0_i32_1 = arith.constant 0 : i32
    return %arg0, %arg1, %c0_i32, %c0_i32_0 : i32, i32, i32, i32
  }
  func.func @transform_1(%arg0: i32, %arg1: i32) -> (i32, i32, i32, i32) {
    %c0_i32 = arith.constant 0 : i32
    %c0_i32_0 = arith.constant 0 : i32
    %c0_i32_1 = arith.constant 0 : i32
    return %arg0, %arg1, %c0_i32, %c0_i32_0 : i32, i32, i32, i32
  }
  func.func @transform_2(%arg0: i32, %arg1: i32) -> (i32, i32, i32, i32) {
    %c0_i32 = arith.constant 0 : i32
    %c0_i32_0 = arith.constant 0 : i32
    %c0_i32_1 = arith.constant 0 : i32
    return %arg0, %arg1, %c0_i32, %c0_i32_0 : i32, i32, i32, i32
  }
}

</mosaic_0001>

<llo_original>
// kernel: tpu_custom_call.1
$region0: #{tpu_custom_call.1}
  #allocation0 [shape = 'u32[]', space=smem, size = 0x4, offset = 0x4, fixed_abs, tag = 'smem constant byte address 0x4 - core index']
  #allocation1 [shape = 'u32[144,128]{1,0:T(1,128)}', space=vmem, size = 0x12000, scoped, tag = 'internal scratch']
  %s0 = inlined_call_operand.vmem [shape: f32[2,1,22,128], index: 0, kind: input, shape index: {}]
  %s1 = inlined_call_operand.vmem [shape: f32[2,1,22,128], index: 1, kind: input, shape index: {}]
  %s2 = inlined_call_operand.hbm [shape: f32[2,1,16,128], index: 2, kind: output, shape index: {}]
  %s3 = sld [smem:[#allocation0]]
  $region41: #{tpu_custom_call.1} parent=0
    _
  %s5 = ssub.s32 1, %s3
  %s6 = scalar_select 0, %s5, %s3
  $region1: #{tpu_custom_call.1} parent=0
    #allocation2 [shape = 'u8[16384]{0}', space=vmem, size = 0x4000, scoped, tag = 'output window, operand 0']
    #allocation3 [shape = 's32[2]{0}', space=sflag, size = 0x8, scoped, tag = 'scoped memory for tpu_custom_call.1']
    %7 = vsyncpa [#allocation3], 0
    %s8 = scalar_lea.sflag [#allocation3], 1
    %9 = vsyncpa %s8, 0
    loop: start=0, step=1, limit=4
    $region2: #{tpu_custom_call.1} parent=1 // loop_pre_header
      _
    $region3: #{tpu_custom_call.1} parent=1 // loop_header
      %s11 = sphi 0, %s15
      %p12 = scmp.ge.s32.totalorder %s11, 4
      %s18 = sphi 0, %s30
      %s19 = sphi 0, %s26
      %s20 = sphi 0, %s18
      %s21 = sphi 0, %s19
      %s22 = sphi 0, %s20
      %s23 = sphi 0, %s21
      %s35 = sphi 0, %s37
      %s38 = sphi 0, %s35
      %s39 = sphi 0, %s38
      %s55 = sphi 0, %s39
      %s63 = sphi 0, %s65
      %s66 = sphi 0, %s63
      %s67 = sphi 0, %s66
      %s83 = sphi 0, %s67
      %s91 = sphi 0, %s93
      %s94 = sphi 0, %s91
      %s95 = sphi 0, %s94
      %s111 = sphi 0, %s95
    $region4: #{tpu_custom_call.1} parent=1 // loop_header_branch
      %14 = sbr.rel (%p12) target = $region8
    $region5: #{tpu_custom_call.1} parent=1 // loop_body
      %s16 = ssub.s32 %s11, 1
      %s17 = ssub.s32 %s11, 2
      %s24 = sadd.s32 1, %s19
      %p25 = scmp.ge.s32.totalorder %s24, 1
      %s26 = scalar_select %p25, 0, %s24
      %s27 = sadd.s32 1, %s18
      %s28 = scalar_select %p25, %s27, %s18
      %p29 = scmp.ge.s32.totalorder %s28, 2
      %s30 = scalar_select %p29, 0, %s28
      %s31 = ssub.s32 %s18, %s30
      %s32 = ssub.s32 %s19, %s26
      %s33 = sor.u32 %s31, %s32
      %p34 = scmp.eq.s32.totalorder %s33, 0
      %s36 = sadd.s32 %s35, 1
      %s37 = scalar_select %p34, %s35, %s36
      %p40 = pneg %p34
      %p41 = scmp.eq.s32.totalorder %s11, 1
      %p42 = por %p40, %p41
      %p43 = scmp.ne.s32.totalorder %s35, %s38
      %p44 = scmp.eq.s32.totalorder %s11, 0
      %p45 = por %p43, %p44
      %p46 = scmp.ne.s32.totalorder %s35, %s38
      %p47 = scmp.eq.s32.totalorder %s16, 1
      %p48 = por %p46, %p47
      %p49 = scmp.ne.s32.totalorder %s38, %s39
      %p50 = scmp.eq.s32.totalorder %s16, 0
      %p51 = por %p49, %p50
      %p52 = scmp.ne.s32.totalorder %s38, %s39
      %p53 = scmp.eq.s32.totalorder %s17, 1
      %p54 = por %p52, %p53
      %p56 = scmp.ne.s32.totalorder %s39, %s55
      %p57 = scmp.eq.s32.totalorder %s17, 0
      %p58 = por %p56, %p57
      %s59 = ssub.s32 %s18, %s30
      %s60 = ssub.s32 %s19, %s26
      %s61 = sor.u32 %s59, %s60
      %p62 = scmp.eq.s32.totalorder %s61, 0
      %s64 = sadd.s32 %s63, 1
      %s65 = scalar_select %p62, %s63, %s64
      %p68 = pneg %p62
      %p69 = scmp.eq.s32.totalorder %s11, 1
      %p70 = por %p68, %p69
      %p71 = scmp.ne.s32.totalorder %s63, %s66
      %p72 = scmp.eq.s32.totalorder %s11, 0
      %p73 = por %p71, %p72
      %p74 = scmp.ne.s32.totalorder %s63, %s66
      %p75 = scmp.eq.s32.totalorder %s16, 1
      %p76 = por %p74, %p75
      %p77 = scmp.ne.s32.totalorder %s66, %s67
      %p78 = scmp.eq.s32.totalorder %s16, 0
      %p79 = por %p77, %p78
      %p80 = scmp.ne.s32.totalorder %s66, %s67
      %p81 = scmp.eq.s32.totalorder %s17, 1
      %p82 = por %p80, %p81
      %p84 = scmp.ne.s32.totalorder %s67, %s83
      %p85 = scmp.eq.s32.totalorder %s17, 0
      %p86 = por %p84, %p85
      %s87 = ssub.s32 %s18, %s30
      %s88 = ssub.s32 %s19, %s26
      %s89 = sor.u32 %s87, %s88
      %p90 = scmp.eq.s32.totalorder %s89, 0
      %s92 = sadd.s32 %s91, 1
      %s93 = scalar_select %p90, %s91, %s92
      %p96 = pneg %p90
      %p97 = scmp.eq.s32.totalorder %s11, 1
      %p98 = por %p96, %p97
      %p99 = scmp.ne.s32.totalorder %s91, %s94
      %p100 = scmp.eq.s32.totalorder %s11, 0
      %p101 = por %p99, %p100
      %p102 = scmp.ne.s32.totalorder %s91, %s94
      %p103 = scmp.eq.s32.totalorder %s16, 1
      %p104 = por %p102, %p103
      %p105 = scmp.ne.s32.totalorder %s94, %s95
      %p106 = scmp.eq.s32.totalorder %s16, 0
      %p107 = por %p105, %p106
      %p108 = scmp.ne.s32.totalorder %s94, %s95
      %p109 = scmp.eq.s32.totalorder %s17, 1
      %p110 = por %p108, %p109
      %p112 = scmp.ne.s32.totalorder %s95, %s111
      %p113 = scmp.eq.s32.totalorder %s17, 0
      %p114 = por %p112, %p113
      %p115 = scmp.le.s32.totalorder 1, %s11
      %p116 = scmp.lt.s32.totalorder %s11, 3
      %p117 = pnand %p115, %p116
      %p118 = pneg %p117
      // Predicated region
      $region9: #{tpu_custom_call.1} parent=5 // pred_check
        _
      $region10: #{tpu_custom_call.1} parent=5 // pred_check_branch
        %120 = sbr.rel (%p117) target = $region12
      $region11: #{tpu_custom_call.1} parent=5 // pred_region
        %s121 = ssub.s32 %s11, 1
      $region12: #{tpu_custom_call.1} parent=5 // pred_fallthru
        _
      %p122 = scmp.lt.s32.totalorder %s11, 2
      // Predicated region
      $region13: #{tpu_custom_call.1} parent=5 // pred_check
        %p123 = pneg %p122
      $region14: #{tpu_custom_call.1} parent=5 // pred_check_branch
        %125 = sbr.rel (%p123) target = $region16
      $region15: #{tpu_custom_call.1} parent=5 // pred_region
        // Predicated region
        $region17: #{tpu_custom_call.1} parent=15 // pred_check
          %p126 = pneg %p45
        $region18: #{tpu_custom_call.1} parent=15 // pred_check_branch
          %128 = sbr.rel (%p126) target = $region20
        $region19: #{tpu_custom_call.1} parent=15 // pred_region
          %p129 = scmp.lt.s32.totalorder %s18, 1
          %s130 = scalar_select %p129, %s18, 1
          %p131 = scmp.lt.s32.totalorder %s19, 0
          %s132 = scalar_select %p131, %s19, 0
          %s133 = smul.addr %s132, 3
          %s134 = smul.addr %s130, 3
          %s135 = sadd.s32 %s133, %s134
          %s136 = smul.addr %s135, 8
          %s137 = scalar_lea.vmem %s0, %s136
        $region20: #{tpu_custom_call.1} parent=15 // pred_fallthru
          _
        // Predicated region
        $region21: #{tpu_custom_call.1} parent=15 // pred_check
          %p138 = pneg %p73
        $region22: #{tpu_custom_call.1} parent=15 // pred_check_branch
          %140 = sbr.rel (%p138) target = $region24
        $region23: #{tpu_custom_call.1} parent=15 // pred_region
          %p141 = scmp.lt.s32.totalorder %s18, 1
          %s142 = scalar_select %p141, %s18, 1
          %p143 = scmp.lt.s32.totalorder %s19, 0
          %s144 = scalar_select %p143, %s19, 0
          %s145 = smul.addr %s144, 3
          %s146 = smul.addr %s142, 3
          %s147 = sadd.s32 %s145, %s146
          %s148 = smul.addr %s147, 8
          %s149 = scalar_lea.vmem %s1, %s148
        $region24: #{tpu_custom_call.1} parent=15 // pred_fallthru
          _
      $region16: #{tpu_custom_call.1} parent=5 // pred_fallthru
        _
      %p150 = scmp.le.s32.totalorder 1, %s11
      %p151 = scmp.lt.s32.totalorder %s11, 3
      %p152 = pnand %p150, %p151
      %p153 = pneg %p152
      // Predicated region
      $region25: #{tpu_custom_call.1} parent=5 // pred_check
        _
      $region26: #{tpu_custom_call.1} parent=5 // pred_check_branch
        %155 = sbr.rel (%p152) target = $region28
      $region27: #{tpu_custom_call.1} parent=5 // pred_region
        %s156 = ssub.s32 %s11, 1
        %p157 = scmp.lt.s32.totalorder %s20, 1
        %s158 = scalar_select %p157, %s20, 1
        %p159 = scmp.lt.s32.totalorder %s21, 0
        %s160 = scalar_select %p159, %s21, 0
        %s161 = smul.addr %s160, 3
        %s162 = smul.addr %s158, 3
        %s163 = sadd.s32 %s161, %s162
        %s164 = smul.addr %s163, 8
        %s165 = scalar_lea.vmem %s0, %s164
        %p166 = pneg %p51
        %p167 = pneg %p48
        %p168 = scmp.lt.s32.totalorder %s20, 1
        %s169 = scalar_select %p168, %s20, 1
        %p170 = scmp.lt.s32.totalorder %s21, 0
        %s171 = scalar_select %p170, %s21, 0
        %s172 = smul.addr %s171, 3
        %s173 = smul.addr %s169, 3
        %s174 = sadd.s32 %s172, %s173
        %s175 = smul.addr %s174, 8
        %s176 = scalar_lea.vmem %s1, %s175
        %p177 = pneg %p79
        %p178 = pneg %p76
        %p179 = pneg %p107
        %p180 = pneg %p104
        %s181 = sand.u32 %s94, 1
        %s182 = scalar_lea.sflag [#allocation3], %s181
        %s183 = sand.u32 %s94, 1
        %s184 = smul.addr %s183, 16
        %s185 = scalar_lea.vmem [#allocation2], %s184
        %p186 = scmp.lt.s32.totalorder %s20, 1
        %s187 = scalar_select %p186, %s20, 1
        %p188 = scmp.lt.s32.totalorder %s21, 0
        %s189 = scalar_select %p188, %s21, 0
        %s190 = smul.addr %s189, 3
        %s191 = smul.addr %s187, 3
        %s192 = sadd.s32 %s190, %s191
        %s193 = smul.addr %s192, 8
        %s194 = scalar_lea.vmem %s0, %s193
        %p195 = scmp.lt.s32.totalorder %s20, 1
        %s196 = scalar_select %p195, %s20, 1
        %p197 = scmp.lt.s32.totalorder %s21, 0
        %s198 = scalar_select %p197, %s21, 0
        %s199 = smul.addr %s198, 3
        %s200 = smul.addr %s196, 3
        %s201 = sadd.s32 %s199, %s200
        %s202 = smul.addr %s201, 8
        %s203 = scalar_lea.vmem %s1, %s202
        %v204 = vld [vmem:[%s194] sm:$0xff]
        %v205 = vld [vmem:[%s194 + $0x8] sm:$0xff]
        %v206 = vld [vmem:[%s194 + $0x10] sm:$0x3f]
        %v207 = vld [vmem:[%s203] sm:$0xff]
        %v208 = vld [vmem:[%s203 + $0x8] sm:$0xff]
        %v209 = vld [vmem:[%s203 + $0x10] sm:$0x3f]
        %210 = vrot.lane.b32.xlu0 %v204, 3
        %v211 = vpop.permute.xlu0 %210
        %212 = vrot.lane.b32.xlu0 %v205, 3
        %v213 = vpop.permute.xlu0 %212
        %214 = vrot.lane.b32.xlu0 %v206, 3
        %v215 = vpop.permute.xlu0 %214
        %216 = vrot.lane.b32.xlu0 %v207, 3
        %v217 = vpop.permute.xlu0 %216
        %218 = vrot.lane.b32.xlu0 %v208, 3
        %v219 = vpop.permute.xlu0 %218
        %220 = vrot.lane.b32.xlu0 %v209, 3
        %v221 = vpop.permute.xlu0 %220
        %vm225 = vcmask 1044480
        %v226 = vrot.slane %v204, 3
        %v227 = vrot.slane %v205, 3
        %v228 = vsel %vm225, %v226, %v227
        %v229 = vrot.slane %v206, 3
        %v230 = vsel %vm225, %v227, %v229
        %v234 = vsub.f32 %v211, %v228
        %v235 = vsub.f32 %v213, %v230
        %v236 = vsub.f32 %v215, %v229
        %v237 = vmul.f32 %v234, %v234
        %v238 = vmul.f32 %v235, %v235
        %v239 = vmul.f32 %v236, %v236
        %v240 = vadd.f32 %v237, 0.81
        %v241 = vadd.f32 %v238, 0.81
        %v242 = vadd.f32 %v239, 0.81
        %v243 = vrsqrt.pop %v240
        %v244 = vrsqrt.pop %v241
        %v245 = vrsqrt.pop %v242
        %v246 = vmul.f32 %v234, %v243
        %v247 = vmul.f32 %v235, %v244
        %v248 = vmul.f32 %v236, %v245
        %v252 = vrot.slane %v207, 3
        %v253 = vrot.slane %v208, 3
        %v254 = vsel %vm225, %v252, %v253
        %v255 = vrot.slane %v209, 3
        %v256 = vsel %vm225, %v253, %v255
        %v260 = vsub.f32 %v217, %v254
        %v261 = vsub.f32 %v219, %v256
        %v262 = vsub.f32 %v221, %v255
        %v263 = vmul.f32 %v260, %v260
        %v264 = vmul.f32 %v261, %v261
        %v265 = vmul.f32 %v262, %v262
        %v266 = vadd.f32 %v263, 0.81
        %v267 = vadd.f32 %v264, 0.81
        %v268 = vadd.f32 %v265, 0.81
        %v269 = vrsqrt.pop %v266
        %v270 = vrsqrt.pop %v267
        %v271 = vrsqrt.pop %v268
        %v272 = vmul.f32 %v260, %v269
        %v273 = vmul.f32 %v261, %v270
        %v274 = vmul.f32 %v262, %v271
        %v275 = vsub.f32 %v246, %v272
        %v276 = vsub.f32 %v247, %v273
        %v277 = vsub.f32 %v248, %v274
        %v278 = vmul.f32 %v275, %v275
        %v279 = vmul.f32 %v276, %v276
        %v280 = vmul.f32 %v277, %v277
        %v281 = vadd.f32 %v278, 0.1
        %v282 = vadd.f32 %v279, 0.1
        %v283 = vadd.f32 %v280, 0.1
        %v284 = vrcp.pop %v281
        %v285 = vrcp.pop %v282
        %v286 = vrcp.pop %v283
        %v287 = vadd.f32 %v284, 0.0
        %v288 = vadd.f32 %v285, 0.0
        %v289 = vadd.f32 %v286, 0.0
        %vm290 = vcmask 1045504
        %v291 = vrot.slane %v204, 2
        %v292 = vrot.slane %v205, 2
        %v293 = vsel %vm290, %v291, %v292
        %v294 = vrot.slane %v206, 2
        %v295 = vsel %vm290, %v292, %v294
        %v299 = vsub.f32 %v211, %v293
        %v300 = vsub.f32 %v213, %v295
        %v301 = vsub.f32 %v215, %v294
        %v302 = vmul.f32 %v299, %v299
        %v303 = vmul.f32 %v300, %v300
        %v304 = vmul.f32 %v301, %v301
        %v305 = vadd.f32 %v302, 0.81
        %v306 = vadd.f32 %v303, 0.81
        %v307 = vadd.f32 %v304, 0.81
        %v308 = vrsqrt.pop %v305
        %v309 = vrsqrt.pop %v306
        %v310 = vrsqrt.pop %v307
        %v311 = vmul.f32 %v299, %v308
        %v312 = vmul.f32 %v300, %v309
        %v313 = vmul.f32 %v301, %v310
        %v314 = vrot.slane %v207, 2
        %v315 = vrot.slane %v208, 2
        %v316 = vsel %vm290, %v314, %v315
        %v317 = vrot.slane %v209, 2
        %v318 = vsel %vm290, %v315, %v317
        %v322 = vsub.f32 %v217, %v316
        %v323 = vsub.f32 %v219, %v318
        %v324 = vsub.f32 %v221, %v317
        %v325 = vmul.f32 %v322, %v322
        %v326 = vmul.f32 %v323, %v323
        %v327 = vmul.f32 %v324, %v324
        %v328 = vadd.f32 %v325, 0.81
        %v329 = vadd.f32 %v326, 0.81
        %v330 = vadd.f32 %v327, 0.81
        %v331 = vrsqrt.pop %v328
        %v332 = vrsqrt.pop %v329
        %v333 = vrsqrt.pop %v330
        %v334 = vmul.f32 %v322, %v331
        %v335 = vmul.f32 %v323, %v332
        %v336 = vmul.f32 %v324, %v333
        %v337 = vsub.f32 %v311, %v334
        %v338 = vsub.f32 %v312, %v335
        %v339 = vsub.f32 %v313, %v336
        %v340 = vmul.f32 %v337, %v337
        %v341 = vmul.f32 %v338, %v338
        %v342 = vmul.f32 %v339, %v339
        %v343 = vadd.f32 %v340, 0.1
        %v344 = vadd.f32 %v341, 0.1
        %v345 = vadd.f32 %v342, 0.1
        %v346 = vrcp.pop %v343
        %v347 = vrcp.pop %v344
        %v348 = vrcp.pop %v345
        %vm352 = vcmask 1046528
        %v353 = vrot.slane %v346, 1
        %v354 = vrot.slane %v347, 1
        %v355 = vsel %vm352, %v353, %v354
        %v356 = vrot.slane %v348, 1
        %v357 = vsel %vm352, %v354, %v356
        %v360 = vadd.f32 %v287, %v355
        %v361 = vadd.f32 %v288, %v357
        %v362 = vadd.f32 %v287, %v346
        %v363 = vadd.f32 %v288, %v347
        %v364 = vadd.f32 %v289, %v348
        %v365 = vrot.slane %v204, 1
        %v366 = vrot.slane %v205, 1
        %v367 = vsel %vm352, %v365, %v366
        %v368 = vrot.slane %v206, 1
        %v369 = vsel %vm352, %v366, %v368
        %v373 = vsub.f32 %v211, %v367
        %v374 = vsub.f32 %v213, %v369
        %v375 = vsub.f32 %v215, %v368
        %v376 = vmul.f32 %v373, %v373
        %v377 = vmul.f32 %v374, %v374
        %v378 = vmul.f32 %v375, %v375
        %v379 = vadd.f32 %v376, 0.81
        %v380 = vadd.f32 %v377, 0.81
        %v381 = vadd.f32 %v378, 0.81
        %v382 = vrsqrt.pop %v379
        %v383 = vrsqrt.pop %v380
        %v384 = vrsqrt.pop %v381
        %v385 = vmul.f32 %v373, %v382
        %v386 = vmul.f32 %v374, %v383
        %v387 = vmul.f32 %v375, %v384
        %v388 = vrot.slane %v207, 1
        %v389 = vrot.slane %v208, 1
        %v390 = vsel %vm352, %v388, %v389
        %v391 = vrot.slane %v209, 1
        %v392 = vsel %vm352, %v389, %v391
        %v396 = vsub.f32 %v217, %v390
        %v397 = vsub.f32 %v219, %v392
        %v398 = vsub.f32 %v221, %v391
        %v399 = vmul.f32 %v396, %v396
        %v400 = vmul.f32 %v397, %v397
        %v401 = vmul.f32 %v398, %v398
        %v402 = vadd.f32 %v399, 0.81
        %v403 = vadd.f32 %v400, 0.81
        %v404 = vadd.f32 %v401, 0.81
        %v405 = vrsqrt.pop %v402
        %v406 = vrsqrt.pop %v403
        %v407 = vrsqrt.pop %v404
        %v408 = vmul.f32 %v396, %v405
        %v409 = vmul.f32 %v397, %v406
        %v410 = vmul.f32 %v398, %v407
        %v411 = vsub.f32 %v385, %v408
        %v412 = vsub.f32 %v386, %v409
        %v413 = vsub.f32 %v387, %v410
        %v414 = vmul.f32 %v411, %v411
        %v415 = vmul.f32 %v412, %v412
        %v416 = vmul.f32 %v413, %v413
        %v417 = vadd.f32 %v414, 0.1
        %v418 = vadd.f32 %v415, 0.1
        %v419 = vadd.f32 %v416, 0.1
        %v420 = vrcp.pop %v417
        %v421 = vrcp.pop %v418
        %v422 = vrcp.pop %v419
        %v426 = vrot.slane %v420, 2
        %v427 = vrot.slane %v421, 2
        %v428 = vsel %vm290, %v426, %v427
        %v429 = vrot.slane %v422, 2
        %v430 = vsel %vm290, %v427, %v429
        %v433 = vadd.f32 %v360, %v428
        %v434 = vadd.f32 %v361, %v430
        %v435 = vadd.f32 %v362, %v420
        %v436 = vadd.f32 %v363, %v421
        %v437 = vadd.f32 %v364, %v422
        %v438 = vsub.f32 %v211, %v204
        %v439 = vsub.f32 %v213, %v205
        %v440 = vsub.f32 %v215, %v206
        %v441 = vmul.f32 %v438, %v438
        %v442 = vmul.f32 %v439, %v439
        %v443 = vmul.f32 %v440, %v440
        %v444 = vadd.f32 %v441, 0.81
        %v445 = vadd.f32 %v442, 0.81
        %v446 = vadd.f32 %v443, 0.81
        %v447 = vrsqrt.pop %v444
        %v448 = vrsqrt.pop %v445
        %v449 = vrsqrt.pop %v446
        %v450 = vmul.f32 %v438, %v447
        %v451 = vmul.f32 %v439, %v448
        %v452 = vmul.f32 %v440, %v449
        %v453 = vsub.f32 %v217, %v207
        %v454 = vsub.f32 %v219, %v208
        %v455 = vsub.f32 %v221, %v209
        %v456 = vmul.f32 %v453, %v453
        %v457 = vmul.f32 %v454, %v454
        %v458 = vmul.f32 %v455, %v455
        %v459 = vadd.f32 %v456, 0.81
        %v460 = vadd.f32 %v457, 0.81
        %v461 = vadd.f32 %v458, 0.81
        %v462 = vrsqrt.pop %v459
        %v463 = vrsqrt.pop %v460
        %v464 = vrsqrt.pop %v461
        %v465 = vmul.f32 %v453, %v462
        %v466 = vmul.f32 %v454, %v463
        %v467 = vmul.f32 %v455, %v464
        %v468 = vsub.f32 %v450, %v465
        %v469 = vsub.f32 %v451, %v466
        %v470 = vsub.f32 %v452, %v467
        %v471 = vmul.f32 %v468, %v468
        %v472 = vmul.f32 %v469, %v469
        %v473 = vmul.f32 %v470, %v470
        %v474 = vadd.f32 %v471, 0.1
        %v475 = vadd.f32 %v472, 0.1
        %v476 = vadd.f32 %v473, 0.1
        %v477 = vrcp.pop %v474
        %v478 = vrcp.pop %v475
        %v479 = vrcp.pop %v476
        %v483 = vrot.slane %v477, 3
        %v484 = vrot.slane %v478, 3
        %v485 = vsel %vm225, %v483, %v484
        %v486 = vrot.slane %v479, 3
        %v487 = vsel %vm225, %v484, %v486
        %v490 = vadd.f32 %v433, %v485
        %v491 = vadd.f32 %v434, %v487
        %v492 = vadd.f32 %v435, %v477
        %v493 = vadd.f32 %v436, %v478
        %v494 = vadd.f32 %v437, %v479
        %v498 = vrot.slane %v492, 3
        %v499 = vrot.slane %v493, 3
        %v500 = vsel %vm225, %v498, %v499
        %v501 = vrot.slane %v494, 3
        %v502 = vsel %vm225, %v499, %v501
        %505 = vrot.lane.b32.xlu0 %v500, 125
        %v506 = vpop.permute.xlu0 %505
        %507 = vrot.lane.b32.xlu0 %v502, 125
        %v508 = vpop.permute.xlu0 %507
        %v509 = vadd.f32 %v490, %v506
        %v510 = vadd.f32 %v491, %v508
        %511 = vrot.lane.b32.xlu0 %v204, 2
        %v512 = vpop.permute.xlu0 %511
        %513 = vrot.lane.b32.xlu0 %v205, 2
        %v514 = vpop.permute.xlu0 %513
        %515 = vrot.lane.b32.xlu0 %v206, 2
        %v516 = vpop.permute.xlu0 %515
        %517 = vrot.lane.b32.xlu0 %v207, 2
        %v518 = vpop.permute.xlu0 %517
        %519 = vrot.lane.b32.xlu0 %v208, 2
        %v520 = vpop.permute.xlu0 %519
        %521 = vrot.lane.b32.xlu0 %v209, 2
        %v522 = vpop.permute.xlu0 %521
        %v523 = vsub.f32 %v512, %v228
        %v524 = vsub.f32 %v514, %v230
        %v525 = vsub.f32 %v516, %v229
        %v526 = vmul.f32 %v523, %v523
        %v527 = vmul.f32 %v524, %v524
        %v528 = vmul.f32 %v525, %v525
        %v529 = vadd.f32 %v526, 0.81
        %v530 = vadd.f32 %v527, 0.81
        %v531 = vadd.f32 %v528, 0.81
        %v532 = vrsqrt.pop %v529
        %v533 = vrsqrt.pop %v530
        %v534 = vrsqrt.pop %v531
        %v535 = vmul.f32 %v523, %v532
        %v536 = vmul.f32 %v524, %v533
        %v537 = vmul.f32 %v525, %v534
        %v538 = vsub.f32 %v518, %v254
        %v539 = vsub.f32 %v520, %v256
        %v540 = vsub.f32 %v522, %v255
        %v541 = vmul.f32 %v538, %v538
        %v542 = vmul.f32 %v539, %v539
        %v543 = vmul.f32 %v540, %v540
        %v544 = vadd.f32 %v541, 0.81
        %v545 = vadd.f32 %v542, 0.81
        %v546 = vadd.f32 %v543, 0.81
        %v547 = vrsqrt.pop %v544
        %v548 = vrsqrt.pop %v545
        %v549 = vrsqrt.pop %v546
        %v550 = vmul.f32 %v538, %v547
        %v551 = vmul.f32 %v539, %v548
        %v552 = vmul.f32 %v540, %v549
        %v553 = vsub.f32 %v535, %v550
        %v554 = vsub.f32 %v536, %v551
        %v555 = vsub.f32 %v537, %v552
        %v556 = vmul.f32 %v553, %v553
        %v557 = vmul.f32 %v554, %v554
        %v558 = vmul.f32 %v555, %v555
        %v559 = vadd.f32 %v556, 0.1
        %v560 = vadd.f32 %v557, 0.1
        %v561 = vadd.f32 %v558, 0.1
        %v562 = vrcp.pop %v559
        %v563 = vrcp.pop %v560
        %v564 = vrcp.pop %v561
        %v565 = vadd.f32 %v509, %v562
        %v566 = vadd.f32 %v510, %v563
        %v567 = vadd.f32 %v562, 0.0
        %v568 = vadd.f32 %v563, 0.0
        %v569 = vadd.f32 %v564, 0.0
        %v570 = vsub.f32 %v512, %v293
        %v571 = vsub.f32 %v514, %v295
        %v572 = vsub.f32 %v516, %v294
        %v573 = vmul.f32 %v570, %v570
        %v574 = vmul.f32 %v571, %v571
        %v575 = vmul.f32 %v572, %v572
        %v576 = vadd.f32 %v573, 0.81
        %v577 = vadd.f32 %v574, 0.81
        %v578 = vadd.f32 %v575, 0.81
        %v579 = vrsqrt.pop %v576
        %v580 = vrsqrt.pop %v577
        %v581 = vrsqrt.pop %v578
        %v582 = vmul.f32 %v570, %v579
        %v583 = vmul.f32 %v571, %v580
        %v584 = vmul.f32 %v572, %v581
        %v585 = vsub.f32 %v518, %v316
        %v586 = vsub.f32 %v520, %v318
        %v587 = vsub.f32 %v522, %v317
        %v588 = vmul.f32 %v585, %v585
        %v589 = vmul.f32 %v586, %v586
        %v590 = vmul.f32 %v587, %v587
        %v591 = vadd.f32 %v588, 0.81
        %v592 = vadd.f32 %v589, 0.81
        %v593 = vadd.f32 %v590, 0.81
        %v594 = vrsqrt.pop %v591
        %v595 = vrsqrt.pop %v592
        %v596 = vrsqrt.pop %v593
        %v597 = vmul.f32 %v585, %v594
        %v598 = vmul.f32 %v586, %v595
        %v599 = vmul.f32 %v587, %v596
        %v600 = vsub.f32 %v582, %v597
        %v601 = vsub.f32 %v583, %v598
        %v602 = vsub.f32 %v584, %v599
        %v603 = vmul.f32 %v600, %v600
        %v604 = vmul.f32 %v601, %v601
        %v605 = vmul.f32 %v602, %v602
        %v606 = vadd.f32 %v603, 0.1
        %v607 = vadd.f32 %v604, 0.1
        %v608 = vadd.f32 %v605, 0.1
        %v609 = vrcp.pop %v606
        %v610 = vrcp.pop %v607
        %v611 = vrcp.pop %v608
        %v615 = vrot.slane %v609, 1
        %v616 = vrot.slane %v610, 1
        %v617 = vsel %vm352, %v615, %v616
        %v618 = vrot.slane %v611, 1
        %v619 = vsel %vm352, %v616, %v618
        %v622 = vadd.f32 %v565, %v617
        %v623 = vadd.f32 %v566, %v619
        %v624 = vadd.f32 %v567, %v609
        %v625 = vadd.f32 %v568, %v610
        %v626 = vadd.f32 %v569, %v611
        %v627 = vsub.f32 %v512, %v367
        %v628 = vsub.f32 %v514, %v369
        %v629 = vsub.f32 %v516, %v368
        %v630 = vmul.f32 %v627, %v627
        %v631 = vmul.f32 %v628, %v628
        %v632 = vmul.f32 %v629, %v629
        %v633 = vadd.f32 %v630, 0.81
        %v634 = vadd.f32 %v631, 0.81
        %v635 = vadd.f32 %v632, 0.81
        %v636 = vrsqrt.pop %v633
        %v637 = vrsqrt.pop %v634
        %v638 = vrsqrt.pop %v635
        %v639 = vmul.f32 %v627, %v636
        %v640 = vmul.f32 %v628, %v637
        %v641 = vmul.f32 %v629, %v638
        %v642 = vsub.f32 %v518, %v390
        %v643 = vsub.f32 %v520, %v392
        %v644 = vsub.f32 %v522, %v391
        %v645 = vmul.f32 %v642, %v642
        %v646 = vmul.f32 %v643, %v643
        %v647 = vmul.f32 %v644, %v644
        %v648 = vadd.f32 %v645, 0.81
        %v649 = vadd.f32 %v646, 0.81
        %v650 = vadd.f32 %v647, 0.81
        %v651 = vrsqrt.pop %v648
        %v652 = vrsqrt.pop %v649
        %v653 = vrsqrt.pop %v650
        %v654 = vmul.f32 %v642, %v651
        %v655 = vmul.f32 %v643, %v652
        %v656 = vmul.f32 %v644, %v653
        %v657 = vsub.f32 %v639, %v654
        %v658 = vsub.f32 %v640, %v655
        %v659 = vsub.f32 %v641, %v656
        %v660 = vmul.f32 %v657, %v657
        %v661 = vmul.f32 %v658, %v658
        %v662 = vmul.f32 %v659, %v659
        %v663 = vadd.f32 %v660, 0.1
        %v664 = vadd.f32 %v661, 0.1
        %v665 = vadd.f32 %v662, 0.1
        %v666 = vrcp.pop %v663
        %v667 = vrcp.pop %v664
        %v668 = vrcp.pop %v665
        %v672 = vrot.slane %v666, 2
        %v673 = vrot.slane %v667, 2
        %v674 = vsel %vm290, %v672, %v673
        %v675 = vrot.slane %v668, 2
        %v676 = vsel %vm290, %v673, %v675
        %v679 = vadd.f32 %v622, %v674
        %v680 = vadd.f32 %v623, %v676
        %v681 = vadd.f32 %v624, %v666
        %v682 = vadd.f32 %v625, %v667
        %v683 = vadd.f32 %v626, %v668
        %v684 = vsub.f32 %v512, %v204
        %v685 = vsub.f32 %v514, %v205
        %v686 = vsub.f32 %v516, %v206
        %v687 = vmul.f32 %v684, %v684
        %v688 = vmul.f32 %v685, %v685
        %v689 = vmul.f32 %v686, %v686
        %v690 = vadd.f32 %v687, 0.81
        %v691 = vadd.f32 %v688, 0.81
        %v692 = vadd.f32 %v689, 0.81
        %v693 = vrsqrt.pop %v690
        %v694 = vrsqrt.pop %v691
        %v695 = vrsqrt.pop %v692
        %v696 = vmul.f32 %v684, %v693
        %v697 = vmul.f32 %v685, %v694
        %v698 = vmul.f32 %v686, %v695
        %v699 = vsub.f32 %v518, %v207
        %v700 = vsub.f32 %v520, %v208
        %v701 = vsub.f32 %v522, %v209
        %v702 = vmul.f32 %v699, %v699
        %v703 = vmul.f32 %v700, %v700
        %v704 = vmul.f32 %v701, %v701
        %v705 = vadd.f32 %v702, 0.81
        %v706 = vadd.f32 %v703, 0.81
        %v707 = vadd.f32 %v704, 0.81
        %v708 = vrsqrt.pop %v705
        %v709 = vrsqrt.pop %v706
        %v710 = vrsqrt.pop %v707
        %v711 = vmul.f32 %v699, %v708
        %v712 = vmul.f32 %v700, %v709
        %v713 = vmul.f32 %v701, %v710
        %v714 = vsub.f32 %v696, %v711
        %v715 = vsub.f32 %v697, %v712
        %v716 = vsub.f32 %v698, %v713
        %v717 = vmul.f32 %v714, %v714
        %v718 = vmul.f32 %v715, %v715
        %v719 = vmul.f32 %v716, %v716
        %v720 = vadd.f32 %v717, 0.1
        %v721 = vadd.f32 %v718, 0.1
        %v722 = vadd.f32 %v719, 0.1
        %v723 = vrcp.pop %v720
        %v724 = vrcp.pop %v721
        %v725 = vrcp.pop %v722
        %v729 = vrot.slane %v723, 3
        %v730 = vrot.slane %v724, 3
        %v731 = vsel %vm225, %v729, %v730
        %v732 = vrot.slane %v725, 3
        %v733 = vsel %vm225, %v730, %v732
        %v736 = vadd.f32 %v679, %v731
        %v737 = vadd.f32 %v680, %v733
        %v738 = vadd.f32 %v681, %v723
        %v739 = vadd.f32 %v682, %v724
        %v740 = vadd.f32 %v683, %v725
        %v744 = vrot.slane %v738, 3
        %v745 = vrot.slane %v739, 3
        %v746 = vsel %vm225, %v744, %v745
        %v747 = vrot.slane %v740, 3
        %v748 = vsel %vm225, %v745, %v747
        %751 = vrot.lane.b32.xlu0 %v746, 126
        %v752 = vpop.permute.xlu0 %751
        %753 = vrot.lane.b32.xlu0 %v748, 126
        %v754 = vpop.permute.xlu0 %753
        %v755 = vadd.f32 %v736, %v752
        %v756 = vadd.f32 %v737, %v754
        %757 = vrot.lane.b32.xlu0 %v204, 1
        %v758 = vpop.permute.xlu0 %757
        %759 = vrot.lane.b32.xlu0 %v205, 1
        %v760 = vpop.permute.xlu0 %759
        %761 = vrot.lane.b32.xlu0 %v206, 1
        %v762 = vpop.permute.xlu0 %761
        %763 = vrot.lane.b32.xlu0 %v207, 1
        %v764 = vpop.permute.xlu0 %763
        %765 = vrot.lane.b32.xlu0 %v208, 1
        %v766 = vpop.permute.xlu0 %765
        %767 = vrot.lane.b32.xlu0 %v209, 1
        %v768 = vpop.permute.xlu0 %767
        %v769 = vsub.f32 %v758, %v228
        %v770 = vsub.f32 %v760, %v230
        %v771 = vsub.f32 %v762, %v229
        %v772 = vmul.f32 %v769, %v769
        %v773 = vmul.f32 %v770, %v770
        %v774 = vmul.f32 %v771, %v771
        %v775 = vadd.f32 %v772, 0.81
        %v776 = vadd.f32 %v773, 0.81
        %v777 = vadd.f32 %v774, 0.81
        %v778 = vrsqrt.pop %v775
        %v779 = vrsqrt.pop %v776
        %v780 = vrsqrt.pop %v777
        %v781 = vmul.f32 %v769, %v778
        %v782 = vmul.f32 %v770, %v779
        %v783 = vmul.f32 %v771, %v780
        %v784 = vsub.f32 %v764, %v254
        %v785 = vsub.f32 %v766, %v256
        %v786 = vsub.f32 %v768, %v255
        %v787 = vmul.f32 %v784, %v784
        %v788 = vmul.f32 %v785, %v785
        %v789 = vmul.f32 %v786, %v786
        %v790 = vadd.f32 %v787, 0.81
        %v791 = vadd.f32 %v788, 0.81
        %v792 = vadd.f32 %v789, 0.81
        %v793 = vrsqrt.pop %v790
        %v794 = vrsqrt.pop %v791
        %v795 = vrsqrt.pop %v792
        %v796 = vmul.f32 %v784, %v793
        %v797 = vmul.f32 %v785, %v794
        %v798 = vmul.f32 %v786, %v795
        %v799 = vsub.f32 %v781, %v796
        %v800 = vsub.f32 %v782, %v797
        %v801 = vsub.f32 %v783, %v798
        %v802 = vmul.f32 %v799, %v799
        %v803 = vmul.f32 %v800, %v800
        %v804 = vmul.f32 %v801, %v801
        %v805 = vadd.f32 %v802, 0.1
        %v806 = vadd.f32 %v803, 0.1
        %v807 = vadd.f32 %v804, 0.1
        %v808 = vrcp.pop %v805
        %v809 = vrcp.pop %v806
        %v810 = vrcp.pop %v807
        %v811 = vadd.f32 %v755, %v808
        %v812 = vadd.f32 %v756, %v809
        %v813 = vadd.f32 %v808, 0.0
        %v814 = vadd.f32 %v809, 0.0
        %v815 = vadd.f32 %v810, 0.0
        %v816 = vsub.f32 %v758, %v293
        %v817 = vsub.f32 %v760, %v295
        %v818 = vsub.f32 %v762, %v294
        %v819 = vmul.f32 %v816, %v816
        %v820 = vmul.f32 %v817, %v817
        %v821 = vmul.f32 %v818, %v818
        %v822 = vadd.f32 %v819, 0.81
        %v823 = vadd.f32 %v820, 0.81
        %v824 = vadd.f32 %v821, 0.81
        %v825 = vrsqrt.pop %v822
        %v826 = vrsqrt.pop %v823
        %v827 = vrsqrt.pop %v824
        %v828 = vmul.f32 %v816, %v825
        %v829 = vmul.f32 %v817, %v826
        %v830 = vmul.f32 %v818, %v827
        %v831 = vsub.f32 %v764, %v316
        %v832 = vsub.f32 %v766, %v318
        %v833 = vsub.f32 %v768, %v317
        %v834 = vmul.f32 %v831, %v831
        %v835 = vmul.f32 %v832, %v832
        %v836 = vmul.f32 %v833, %v833
        %v837 = vadd.f32 %v834, 0.81
        %v838 = vadd.f32 %v835, 0.81
        %v839 = vadd.f32 %v836, 0.81
        %v840 = vrsqrt.pop %v837
        %v841 = vrsqrt.pop %v838
        %v842 = vrsqrt.pop %v839
        %v843 = vmul.f32 %v831, %v840
        %v844 = vmul.f32 %v832, %v841
        %v845 = vmul.f32 %v833, %v842
        %v846 = vsub.f32 %v828, %v843
        %v847 = vsub.f32 %v829, %v844
        %v848 = vsub.f32 %v830, %v845
        %v849 = vmul.f32 %v846, %v846
        %v850 = vmul.f32 %v847, %v847
        %v851 = vmul.f32 %v848, %v848
        %v852 = vadd.f32 %v849, 0.1
        %v853 = vadd.f32 %v850, 0.1
        %v854 = vadd.f32 %v851, 0.1
        %v855 = vrcp.pop %v852
        %v856 = vrcp.pop %v853
        %v857 = vrcp.pop %v854
        %v861 = vrot.slane %v855, 1
        %v862 = vrot.slane %v856, 1
        %v863 = vsel %vm352, %v861, %v862
        %v864 = vrot.slane %v857, 1
        %v865 = vsel %vm352, %v862, %v864
        %v868 = vadd.f32 %v811, %v863
        %v869 = vadd.f32 %v812, %v865
        %v870 = vadd.f32 %v813, %v855
        %v871 = vadd.f32 %v814, %v856
        %v872 = vadd.f32 %v815, %v857
        %v873 = vsub.f32 %v758, %v367
        %v874 = vsub.f32 %v760, %v369
        %v875 = vsub.f32 %v762, %v368
        %v876 = vmul.f32 %v873, %v873
        %v877 = vmul.f32 %v874, %v874
        %v878 = vmul.f32 %v875, %v875
        %v879 = vadd.f32 %v876, 0.81
        %v880 = vadd.f32 %v877, 0.81
        %v881 = vadd.f32 %v878, 0.81
        %v882 = vrsqrt.pop %v879
        %v883 = vrsqrt.pop %v880
        %v884 = vrsqrt.pop %v881
        %v885 = vmul.f32 %v873, %v882
        %v886 = vmul.f32 %v874, %v883
        %v887 = vmul.f32 %v875, %v884
        %v888 = vsub.f32 %v764, %v390
        %v889 = vsub.f32 %v766, %v392
        %v890 = vsub.f32 %v768, %v391
        %v891 = vmul.f32 %v888, %v888
        %v892 = vmul.f32 %v889, %v889
        %v893 = vmul.f32 %v890, %v890
        %v894 = vadd.f32 %v891, 0.81
        %v895 = vadd.f32 %v892, 0.81
        %v896 = vadd.f32 %v893, 0.81
        %v897 = vrsqrt.pop %v894
        %v898 = vrsqrt.pop %v895
        %v899 = vrsqrt.pop %v896
        %v900 = vmul.f32 %v888, %v897
        %v901 = vmul.f32 %v889, %v898
        %v902 = vmul.f32 %v890, %v899
        %v903 = vsub.f32 %v885, %v900
        %v904 = vsub.f32 %v886, %v901
        %v905 = vsub.f32 %v887, %v902
        %v906 = vmul.f32 %v903, %v903
        %v907 = vmul.f32 %v904, %v904
        %v908 = vmul.f32 %v905, %v905
        %v909 = vadd.f32 %v906, 0.1
        %v910 = vadd.f32 %v907, 0.1
        %v911 = vadd.f32 %v908, 0.1
        %v912 = vrcp.pop %v909
        %v913 = vrcp.pop %v910
        %v914 = vrcp.pop %v911
        %v918 = vrot.slane %v912, 2
        %v919 = vrot.slane %v913, 2
        %v920 = vsel %vm290, %v918, %v919
        %v921 = vrot.slane %v914, 2
        %v922 = vsel %vm290, %v919, %v921
        %v925 = vadd.f32 %v868, %v920
        %v926 = vadd.f32 %v869, %v922
        %v927 = vadd.f32 %v870, %v912
        %v928 = vadd.f32 %v871, %v913
        %v929 = vadd.f32 %v872, %v914
        %v930 = vsub.f32 %v758, %v204
        %v931 = vsub.f32 %v760, %v205
        %v932 = vsub.f32 %v762, %v206
        %v933 = vmul.f32 %v930, %v930
        %v934 = vmul.f32 %v931, %v931
        %v935 = vmul.f32 %v932, %v932
        %v936 = vadd.f32 %v933, 0.81
        %v937 = vadd.f32 %v934, 0.81
        %v938 = vadd.f32 %v935, 0.81
        %v939 = vrsqrt.pop %v936
        %v940 = vrsqrt.pop %v937
        %v941 = vrsqrt.pop %v938
        %v942 = vmul.f32 %v930, %v939
        %v943 = vmul.f32 %v931, %v940
        %v944 = vmul.f32 %v932, %v941
        %v945 = vsub.f32 %v764, %v207
        %v946 = vsub.f32 %v766, %v208
        %v947 = vsub.f32 %v768, %v209
        %v948 = vmul.f32 %v945, %v945
        %v949 = vmul.f32 %v946, %v946
        %v950 = vmul.f32 %v947, %v947
        %v951 = vadd.f32 %v948, 0.81
        %v952 = vadd.f32 %v949, 0.81
        %v953 = vadd.f32 %v950, 0.81
        %v954 = vrsqrt.pop %v951
        %v955 = vrsqrt.pop %v952
        %v956 = vrsqrt.pop %v953
        %v957 = vmul.f32 %v945, %v954
        %v958 = vmul.f32 %v946, %v955
        %v959 = vmul.f32 %v947, %v956
        %v960 = vsub.f32 %v942, %v957
        %v961 = vsub.f32 %v943, %v958
        %v962 = vsub.f32 %v944, %v959
        %v963 = vmul.f32 %v960, %v960
        %v964 = vmul.f32 %v961, %v961
        %v965 = vmul.f32 %v962, %v962
        %v966 = vadd.f32 %v963, 0.1
        %v967 = vadd.f32 %v964, 0.1
        %v968 = vadd.f32 %v965, 0.1
        %v969 = vrcp.pop %v966
        %v970 = vrcp.pop %v967
        %v971 = vrcp.pop %v968
        %v975 = vrot.slane %v969, 3
        %v976 = vrot.slane %v970, 3
        %v977 = vsel %vm225, %v975, %v976
        %v978 = vrot.slane %v971, 3
        %v979 = vsel %vm225, %v976, %v978
        %v982 = vadd.f32 %v925, %v977
        %v983 = vadd.f32 %v926, %v979
        %v984 = vadd.f32 %v927, %v969
        %v985 = vadd.f32 %v928, %v970
        %v986 = vadd.f32 %v929, %v971
        %v990 = vrot.slane %v984, 3
        %v991 = vrot.slane %v985, 3
        %v992 = vsel %vm225, %v990, %v991
        %v993 = vrot.slane %v986, 3
        %v994 = vsel %vm225, %v991, %v993
        %997 = vrot.lane.b32.xlu0 %v992, 127
        %v998 = vpop.permute.xlu0 %997
        %999 = vrot.lane.b32.xlu0 %v994, 127
        %v1000 = vpop.permute.xlu0 %999
        %v1001 = vadd.f32 %v982, %v998
        %v1002 = vadd.f32 %v983, %v1000
        %v1003 = vsub.f32 %v204, %v228
        %v1004 = vsub.f32 %v205, %v230
        %v1005 = vsub.f32 %v206, %v229
        %v1006 = vmul.f32 %v1003, %v1003
        %v1007 = vmul.f32 %v1004, %v1004
        %v1008 = vmul.f32 %v1005, %v1005
        %v1009 = vadd.f32 %v1006, 0.81
        %v1010 = vadd.f32 %v1007, 0.81
        %v1011 = vadd.f32 %v1008, 0.81
        %v1012 = vrsqrt.pop %v1009
        %v1013 = vrsqrt.pop %v1010
        %v1014 = vrsqrt.pop %v1011
        %v1015 = vmul.f32 %v1003, %v1012
        %v1016 = vmul.f32 %v1004, %v1013
        %v1017 = vmul.f32 %v1005, %v1014
        %v1018 = vsub.f32 %v207, %v254
        %v1019 = vsub.f32 %v208, %v256
        %v1020 = vsub.f32 %v209, %v255
        %v1021 = vmul.f32 %v1018, %v1018
        %v1022 = vmul.f32 %v1019, %v1019
        %v1023 = vmul.f32 %v1020, %v1020
        %v1024 = vadd.f32 %v1021, 0.81
        %v1025 = vadd.f32 %v1022, 0.81
        %v1026 = vadd.f32 %v1023, 0.81
        %v1027 = vrsqrt.pop %v1024
        %v1028 = vrsqrt.pop %v1025
        %v1029 = vrsqrt.pop %v1026
        %v1030 = vmul.f32 %v1018, %v1027
        %v1031 = vmul.f32 %v1019, %v1028
        %v1032 = vmul.f32 %v1020, %v1029
        %v1033 = vsub.f32 %v1015, %v1030
        %v1034 = vsub.f32 %v1016, %v1031
        %v1035 = vsub.f32 %v1017, %v1032
        %v1036 = vmul.f32 %v1033, %v1033
        %v1037 = vmul.f32 %v1034, %v1034
        %v1038 = vmul.f32 %v1035, %v1035
        %v1039 = vadd.f32 %v1036, 0.1
        %v1040 = vadd.f32 %v1037, 0.1
        %v1041 = vadd.f32 %v1038, 0.1
        %v1042 = vrcp.pop %v1039
        %v1043 = vrcp.pop %v1040
        %v1044 = vrcp.pop %v1041
        %v1045 = vadd.f32 %v1001, %v1042
        %v1046 = vadd.f32 %v1002, %v1043
        %v1047 = vadd.f32 %v1042, 0.0
        %v1048 = vadd.f32 %v1043, 0.0
        %v1049 = vadd.f32 %v1044, 0.0
        %v1050 = vsub.f32 %v204, %v293
        %v1051 = vsub.f32 %v205, %v295
        %v1052 = vsub.f32 %v206, %v294
        %v1053 = vmul.f32 %v1050, %v1050
        %v1054 = vmul.f32 %v1051, %v1051
        %v1055 = vmul.f32 %v1052, %v1052
        %v1056 = vadd.f32 %v1053, 0.81
        %v1057 = vadd.f32 %v1054, 0.81
        %v1058 = vadd.f32 %v1055, 0.81
        %v1059 = vrsqrt.pop %v1056
        %v1060 = vrsqrt.pop %v1057
        %v1061 = vrsqrt.pop %v1058
        %v1062 = vmul.f32 %v1050, %v1059
        %v1063 = vmul.f32 %v1051, %v1060
        %v1064 = vmul.f32 %v1052, %v1061
        %v1065 = vsub.f32 %v207, %v316
        %v1066 = vsub.f32 %v208, %v318
        %v1067 = vsub.f32 %v209, %v317
        %v1068 = vmul.f32 %v1065, %v1065
        %v1069 = vmul.f32 %v1066, %v1066
        %v1070 = vmul.f32 %v1067, %v1067
        %v1071 = vadd.f32 %v1068, 0.81
        %v1072 = vadd.f32 %v1069, 0.81
        %v1073 = vadd.f32 %v1070, 0.81
        %v1074 = vrsqrt.pop %v1071
        %v1075 = vrsqrt.pop %v1072
        %v1076 = vrsqrt.pop %v1073
        %v1077 = vmul.f32 %v1065, %v1074
        %v1078 = vmul.f32 %v1066, %v1075
        %v1079 = vmul.f32 %v1067, %v1076
        %v1080 = vsub.f32 %v1062, %v1077
        %v1081 = vsub.f32 %v1063, %v1078
        %v1082 = vsub.f32 %v1064, %v1079
        %v1083 = vmul.f32 %v1080, %v1080
        %v1084 = vmul.f32 %v1081, %v1081
        %v1085 = vmul.f32 %v1082, %v1082
        %v1086 = vadd.f32 %v1083, 0.1
        %v1087 = vadd.f32 %v1084, 0.1
        %v1088 = vadd.f32 %v1085, 0.1
        %v1089 = vrcp.pop %v1086
        %v1090 = vrcp.pop %v1087
        %v1091 = vrcp.pop %v1088
        %v1095 = vrot.slane %v1089, 1
        %v1096 = vrot.slane %v1090, 1
        %v1097 = vsel %vm352, %v1095, %v1096
        %v1098 = vrot.slane %v1091, 1
        %v1099 = vsel %vm352, %v1096, %v1098
        %v1102 = vadd.f32 %v1045, %v1097
        %v1103 = vadd.f32 %v1046, %v1099
        %v1104 = vadd.f32 %v1047, %v1089
        %v1105 = vadd.f32 %v1048, %v1090
        %v1106 = vadd.f32 %v1049, %v1091
        %v1107 = vsub.f32 %v204, %v367
        %v1108 = vsub.f32 %v205, %v369
        %v1109 = vsub.f32 %v206, %v368
        %v1110 = vmul.f32 %v1107, %v1107
        %v1111 = vmul.f32 %v1108, %v1108
        %v1112 = vmul.f32 %v1109, %v1109
        %v1113 = vadd.f32 %v1110, 0.81
        %v1114 = vadd.f32 %v1111, 0.81
        %v1115 = vadd.f32 %v1112, 0.81
        %v1116 = vrsqrt.pop %v1113
        %v1117 = vrsqrt.pop %v1114
        %v1118 = vrsqrt.pop %v1115
        %v1119 = vmul.f32 %v1107, %v1116
        %v1120 = vmul.f32 %v1108, %v1117
        %v1121 = vmul.f32 %v1109, %v1118
        %v1122 = vsub.f32 %v207, %v390
        %v1123 = vsub.f32 %v208, %v392
        %v1124 = vsub.f32 %v209, %v391
        %v1125 = vmul.f32 %v1122, %v1122
        %v1126 = vmul.f32 %v1123, %v1123
        %v1127 = vmul.f32 %v1124, %v1124
        %v1128 = vadd.f32 %v1125, 0.81
        %v1129 = vadd.f32 %v1126, 0.81
        %v1130 = vadd.f32 %v1127, 0.81
        %v1131 = vrsqrt.pop %v1128
        %v1132 = vrsqrt.pop %v1129
        %v1133 = vrsqrt.pop %v1130
        %v1134 = vmul.f32 %v1122, %v1131
        %v1135 = vmul.f32 %v1123, %v1132
        %v1136 = vmul.f32 %v1124, %v1133
        %v1137 = vsub.f32 %v1119, %v1134
        %v1138 = vsub.f32 %v1120, %v1135
        %v1139 = vsub.f32 %v1121, %v1136
        %v1140 = vmul.f32 %v1137, %v1137
        %v1141 = vmul.f32 %v1138, %v1138
        %v1142 = vmul.f32 %v1139, %v1139
        %v1143 = vadd.f32 %v1140, 0.1
        %v1144 = vadd.f32 %v1141, 0.1
        %v1145 = vadd.f32 %v1142, 0.1
        %v1146 = vrcp.pop %v1143
        %v1147 = vrcp.pop %v1144
        %v1148 = vrcp.pop %v1145
        %v1152 = vrot.slane %v1146, 2
        %v1153 = vrot.slane %v1147, 2
        %v1154 = vsel %vm290, %v1152, %v1153
        %v1155 = vrot.slane %v1148, 2
        %v1156 = vsel %vm290, %v1153, %v1155
        %v1159 = vadd.f32 %v1102, %v1154
        %v1160 = vadd.f32 %v1103, %v1156
        %v1161 = vadd.f32 %v1104, %v1146
        %v1162 = vadd.f32 %v1105, %v1147
        %v1163 = vadd.f32 %v1106, %v1148
        %v1167 = vrot.slane %v1161, 3
        %v1168 = vrot.slane %v1162, 3
        %v1169 = vsel %vm225, %v1167, %v1168
        %v1170 = vrot.slane %v1163, 3
        %v1171 = vsel %vm225, %v1168, %v1170
        %v1174 = vadd.f32 %v1159, %v1169
        %v1175 = vadd.f32 %v1160, %v1171
        %1176 = vrot.lane.b32.xlu0 %v204, 127
        %v1177 = vpop.permute.xlu0 %1176
        %1178 = vrot.lane.b32.xlu0 %v205, 127
        %v1179 = vpop.permute.xlu0 %1178
        %1180 = vrot.lane.b32.xlu0 %v206, 127
        %v1181 = vpop.permute.xlu0 %1180
        %1182 = vrot.lane.b32.xlu0 %v207, 127
        %v1183 = vpop.permute.xlu0 %1182
        %1184 = vrot.lane.b32.xlu0 %v208, 127
        %v1185 = vpop.permute.xlu0 %1184
        %1186 = vrot.lane.b32.xlu0 %v209, 127
        %v1187 = vpop.permute.xlu0 %1186
        %v1188 = vsub.f32 %v1177, %v228
        %v1189 = vsub.f32 %v1179, %v230
        %v1190 = vsub.f32 %v1181, %v229
        %v1191 = vmul.f32 %v1188, %v1188
        %v1192 = vmul.f32 %v1189, %v1189
        %v1193 = vmul.f32 %v1190, %v1190
        %v1194 = vadd.f32 %v1191, 0.81
        %v1195 = vadd.f32 %v1192, 0.81
        %v1196 = vadd.f32 %v1193, 0.81
        %v1197 = vrsqrt.pop %v1194
        %v1198 = vrsqrt.pop %v1195
        %v1199 = vrsqrt.pop %v1196
        %v1200 = vmul.f32 %v1188, %v1197
        %v1201 = vmul.f32 %v1189, %v1198
        %v1202 = vmul.f32 %v1190, %v1199
        %v1203 = vsub.f32 %v1183, %v254
        %v1204 = vsub.f32 %v1185, %v256
        %v1205 = vsub.f32 %v1187, %v255
        %v1206 = vmul.f32 %v1203, %v1203
        %v1207 = vmul.f32 %v1204, %v1204
        %v1208 = vmul.f32 %v1205, %v1205
        %v1209 = vadd.f32 %v1206, 0.81
        %v1210 = vadd.f32 %v1207, 0.81
        %v1211 = vadd.f32 %v1208, 0.81
        %v1212 = vrsqrt.pop %v1209
        %v1213 = vrsqrt.pop %v1210
        %v1214 = vrsqrt.pop %v1211
        %v1215 = vmul.f32 %v1203, %v1212
        %v1216 = vmul.f32 %v1204, %v1213
        %v1217 = vmul.f32 %v1205, %v1214
        %v1218 = vsub.f32 %v1200, %v1215
        %v1219 = vsub.f32 %v1201, %v1216
        %v1220 = vsub.f32 %v1202, %v1217
        %v1221 = vmul.f32 %v1218, %v1218
        %v1222 = vmul.f32 %v1219, %v1219
        %v1223 = vmul.f32 %v1220, %v1220
        %v1224 = vadd.f32 %v1221, 0.1
        %v1225 = vadd.f32 %v1222, 0.1
        %v1226 = vadd.f32 %v1223, 0.1
        %v1227 = vrcp.pop %v1224
        %v1228 = vrcp.pop %v1225
        %v1229 = vrcp.pop %v1226
        %v1230 = vadd.f32 %v1174, %v1227
        %v1231 = vadd.f32 %v1175, %v1228
        %v1232 = vadd.f32 %v1227, 0.0
        %v1233 = vadd.f32 %v1228, 0.0
        %v1234 = vadd.f32 %v1229, 0.0
        %v1235 = vsub.f32 %v1177, %v293
        %v1236 = vsub.f32 %v1179, %v295
        %v1237 = vsub.f32 %v1181, %v294
        %v1238 = vmul.f32 %v1235, %v1235
        %v1239 = vmul.f32 %v1236, %v1236
        %v1240 = vmul.f32 %v1237, %v1237
        %v1241 = vadd.f32 %v1238, 0.81
        %v1242 = vadd.f32 %v1239, 0.81
        %v1243 = vadd.f32 %v1240, 0.81
        %v1244 = vrsqrt.pop %v1241
        %v1245 = vrsqrt.pop %v1242
        %v1246 = vrsqrt.pop %v1243
        %v1247 = vmul.f32 %v1235, %v1244
        %v1248 = vmul.f32 %v1236, %v1245
        %v1249 = vmul.f32 %v1237, %v1246
        %v1250 = vsub.f32 %v1183, %v316
        %v1251 = vsub.f32 %v1185, %v318
        %v1252 = vsub.f32 %v1187, %v317
        %v1253 = vmul.f32 %v1250, %v1250
        %v1254 = vmul.f32 %v1251, %v1251
        %v1255 = vmul.f32 %v1252, %v1252
        %v1256 = vadd.f32 %v1253, 0.81
        %v1257 = vadd.f32 %v1254, 0.81
        %v1258 = vadd.f32 %v1255, 0.81
        %v1259 = vrsqrt.pop %v1256
        %v1260 = vrsqrt.pop %v1257
        %v1261 = vrsqrt.pop %v1258
        %v1262 = vmul.f32 %v1250, %v1259
        %v1263 = vmul.f32 %v1251, %v1260
        %v1264 = vmul.f32 %v1252, %v1261
        %v1265 = vsub.f32 %v1247, %v1262
        %v1266 = vsub.f32 %v1248, %v1263
        %v1267 = vsub.f32 %v1249, %v1264
        %v1268 = vmul.f32 %v1265, %v1265
        %v1269 = vmul.f32 %v1266, %v1266
        %v1270 = vmul.f32 %v1267, %v1267
        %v1271 = vadd.f32 %v1268, 0.1
        %v1272 = vadd.f32 %v1269, 0.1
        %v1273 = vadd.f32 %v1270, 0.1
        %v1274 = vrcp.pop %v1271
        %v1275 = vrcp.pop %v1272
        %v1276 = vrcp.pop %v1273
        %v1280 = vrot.slane %v1274, 1
        %v1281 = vrot.slane %v1275, 1
        %v1282 = vsel %vm352, %v1280, %v1281
        %v1283 = vrot.slane %v1276, 1
        %v1284 = vsel %vm352, %v1281, %v1283
        %v1287 = vadd.f32 %v1230, %v1282
        %v1288 = vadd.f32 %v1231, %v1284
        %v1289 = vadd.f32 %v1232, %v1274
        %v1290 = vadd.f32 %v1233, %v1275
        %v1291 = vadd.f32 %v1234, %v1276
        %v1292 = vsub.f32 %v1177, %v367
        %v1293 = vsub.f32 %v1179, %v369
        %v1294 = vsub.f32 %v1181, %v368
        %v1295 = vmul.f32 %v1292, %v1292
        %v1296 = vmul.f32 %v1293, %v1293
        %v1297 = vmul.f32 %v1294, %v1294
        %v1298 = vadd.f32 %v1295, 0.81
        %v1299 = vadd.f32 %v1296, 0.81
        %v1300 = vadd.f32 %v1297, 0.81
        %v1301 = vrsqrt.pop %v1298
        %v1302 = vrsqrt.pop %v1299
        %v1303 = vrsqrt.pop %v1300
        %v1304 = vmul.f32 %v1292, %v1301
        %v1305 = vmul.f32 %v1293, %v1302
        %v1306 = vmul.f32 %v1294, %v1303
        %v1307 = vsub.f32 %v1183, %v390
        %v1308 = vsub.f32 %v1185, %v392
        %v1309 = vsub.f32 %v1187, %v391
        %v1310 = vmul.f32 %v1307, %v1307
        %v1311 = vmul.f32 %v1308, %v1308
        %v1312 = vmul.f32 %v1309, %v1309
        %v1313 = vadd.f32 %v1310, 0.81
        %v1314 = vadd.f32 %v1311, 0.81
        %v1315 = vadd.f32 %v1312, 0.81
        %v1316 = vrsqrt.pop %v1313
        %v1317 = vrsqrt.pop %v1314
        %v1318 = vrsqrt.pop %v1315
        %v1319 = vmul.f32 %v1307, %v1316
        %v1320 = vmul.f32 %v1308, %v1317
        %v1321 = vmul.f32 %v1309, %v1318
        %v1322 = vsub.f32 %v1304, %v1319
        %v1323 = vsub.f32 %v1305, %v1320
        %v1324 = vsub.f32 %v1306, %v1321
        %v1325 = vmul.f32 %v1322, %v1322
        %v1326 = vmul.f32 %v1323, %v1323
        %v1327 = vmul.f32 %v1324, %v1324
        %v1328 = vadd.f32 %v1325, 0.1
        %v1329 = vadd.f32 %v1326, 0.1
        %v1330 = vadd.f32 %v1327, 0.1
        %v1331 = vrcp.pop %v1328
        %v1332 = vrcp.pop %v1329
        %v1333 = vrcp.pop %v1330
        %v1337 = vrot.slane %v1331, 2
        %v1338 = vrot.slane %v1332, 2
        %v1339 = vsel %vm290, %v1337, %v1338
        %v1340 = vrot.slane %v1333, 2
        %v1341 = vsel %vm290, %v1338, %v1340
        %v1344 = vadd.f32 %v1287, %v1339
        %v1345 = vadd.f32 %v1288, %v1341
        %v1346 = vadd.f32 %v1289, %v1331
        %v1347 = vadd.f32 %v1290, %v1332
        %v1348 = vadd.f32 %v1291, %v1333
        %v1352 = vrot.slane %v1346, 3
        %v1353 = vrot.slane %v1347, 3
        %v1354 = vsel %vm225, %v1352, %v1353
        %v1355 = vrot.slane %v1348, 3
        %v1356 = vsel %vm225, %v1353, %v1355
        %1359 = vrot.lane.b32.xlu0 %v1354, 1
        %v1360 = vpop.permute.xlu0 %1359
        %1361 = vrot.lane.b32.xlu0 %v1356, 1
        %v1362 = vpop.permute.xlu0 %1361
        %v1363 = vadd.f32 %v1344, %v1360
        %v1364 = vadd.f32 %v1345, %v1362
        %1365 = vrot.lane.b32.xlu0 %v204, 126
        %v1366 = vpop.permute.xlu0 %1365
        %1367 = vrot.lane.b32.xlu0 %v205, 126
        %v1368 = vpop.permute.xlu0 %1367
        %1369 = vrot.lane.b32.xlu0 %v206, 126
        %v1370 = vpop.permute.xlu0 %1369
        %1371 = vrot.lane.b32.xlu0 %v207, 126
        %v1372 = vpop.permute.xlu0 %1371
        %1373 = vrot.lane.b32.xlu0 %v208, 126
        %v1374 = vpop.permute.xlu0 %1373
        %1375 = vrot.lane.b32.xlu0 %v209, 126
        %v1376 = vpop.permute.xlu0 %1375
        %v1377 = vsub.f32 %v1366, %v228
        %v1378 = vsub.f32 %v1368, %v230
        %v1379 = vsub.f32 %v1370, %v229
        %v1380 = vmul.f32 %v1377, %v1377
        %v1381 = vmul.f32 %v1378, %v1378
        %v1382 = vmul.f32 %v1379, %v1379
        %v1383 = vadd.f32 %v1380, 0.81
        %v1384 = vadd.f32 %v1381, 0.81
        %v1385 = vadd.f32 %v1382, 0.81
        %v1386 = vrsqrt.pop %v1383
        %v1387 = vrsqrt.pop %v1384
        %v1388 = vrsqrt.pop %v1385
        %v1389 = vmul.f32 %v1377, %v1386
        %v1390 = vmul.f32 %v1378, %v1387
        %v1391 = vmul.f32 %v1379, %v1388
        %v1392 = vsub.f32 %v1372, %v254
        %v1393 = vsub.f32 %v1374, %v256
        %v1394 = vsub.f32 %v1376, %v255
        %v1395 = vmul.f32 %v1392, %v1392
        %v1396 = vmul.f32 %v1393, %v1393
        %v1397 = vmul.f32 %v1394, %v1394
        %v1398 = vadd.f32 %v1395, 0.81
        %v1399 = vadd.f32 %v1396, 0.81
        %v1400 = vadd.f32 %v1397, 0.81
        %v1401 = vrsqrt.pop %v1398
        %v1402 = vrsqrt.pop %v1399
        %v1403 = vrsqrt.pop %v1400
        %v1404 = vmul.f32 %v1392, %v1401
        %v1405 = vmul.f32 %v1393, %v1402
        %v1406 = vmul.f32 %v1394, %v1403
        %v1407 = vsub.f32 %v1389, %v1404
        %v1408 = vsub.f32 %v1390, %v1405
        %v1409 = vsub.f32 %v1391, %v1406
        %v1410 = vmul.f32 %v1407, %v1407
        %v1411 = vmul.f32 %v1408, %v1408
        %v1412 = vmul.f32 %v1409, %v1409
        %v1413 = vadd.f32 %v1410, 0.1
        %v1414 = vadd.f32 %v1411, 0.1
        %v1415 = vadd.f32 %v1412, 0.1
        %v1416 = vrcp.pop %v1413
        %v1417 = vrcp.pop %v1414
        %v1418 = vrcp.pop %v1415
        %v1419 = vadd.f32 %v1363, %v1416
        %v1420 = vadd.f32 %v1364, %v1417
        %v1421 = vadd.f32 %v1416, 0.0
        %v1422 = vadd.f32 %v1417, 0.0
        %v1423 = vadd.f32 %v1418, 0.0
        %v1424 = vsub.f32 %v1366, %v293
        %v1425 = vsub.f32 %v1368, %v295
        %v1426 = vsub.f32 %v1370, %v294
        %v1427 = vmul.f32 %v1424, %v1424
        %v1428 = vmul.f32 %v1425, %v1425
        %v1429 = vmul.f32 %v1426, %v1426
        %v1430 = vadd.f32 %v1427, 0.81
        %v1431 = vadd.f32 %v1428, 0.81
        %v1432 = vadd.f32 %v1429, 0.81
        %v1433 = vrsqrt.pop %v1430
        %v1434 = vrsqrt.pop %v1431
        %v1435 = vrsqrt.pop %v1432
        %v1436 = vmul.f32 %v1424, %v1433
        %v1437 = vmul.f32 %v1425, %v1434
        %v1438 = vmul.f32 %v1426, %v1435
        %v1439 = vsub.f32 %v1372, %v316
        %v1440 = vsub.f32 %v1374, %v318
        %v1441 = vsub.f32 %v1376, %v317
        %v1442 = vmul.f32 %v1439, %v1439
        %v1443 = vmul.f32 %v1440, %v1440
        %v1444 = vmul.f32 %v1441, %v1441
        %v1445 = vadd.f32 %v1442, 0.81
        %v1446 = vadd.f32 %v1443, 0.81
        %v1447 = vadd.f32 %v1444, 0.81
        %v1448 = vrsqrt.pop %v1445
        %v1449 = vrsqrt.pop %v1446
        %v1450 = vrsqrt.pop %v1447
        %v1451 = vmul.f32 %v1439, %v1448
        %v1452 = vmul.f32 %v1440, %v1449
        %v1453 = vmul.f32 %v1441, %v1450
        %v1454 = vsub.f32 %v1436, %v1451
        %v1455 = vsub.f32 %v1437, %v1452
        %v1456 = vsub.f32 %v1438, %v1453
        %v1457 = vmul.f32 %v1454, %v1454
        %v1458 = vmul.f32 %v1455, %v1455
        %v1459 = vmul.f32 %v1456, %v1456
        %v1460 = vadd.f32 %v1457, 0.1
        %v1461 = vadd.f32 %v1458, 0.1
        %v1462 = vadd.f32 %v1459, 0.1
        %v1463 = vrcp.pop %v1460
        %v1464 = vrcp.pop %v1461
        %v1465 = vrcp.pop %v1462
        %v1469 = vrot.slane %v1463, 1
        %v1470 = vrot.slane %v1464, 1
        %v1471 = vsel %vm352, %v1469, %v1470
        %v1472 = vrot.slane %v1465, 1
        %v1473 = vsel %vm352, %v1470, %v1472
        %v1476 = vadd.f32 %v1419, %v1471
        %v1477 = vadd.f32 %v1420, %v1473
        %v1478 = vadd.f32 %v1421, %v1463
        %v1479 = vadd.f32 %v1422, %v1464
        %v1480 = vadd.f32 %v1423, %v1465
        %v1481 = vsub.f32 %v1366, %v367
        %v1482 = vsub.f32 %v1368, %v369
        %v1483 = vsub.f32 %v1370, %v368
        %v1484 = vmul.f32 %v1481, %v1481
        %v1485 = vmul.f32 %v1482, %v1482
        %v1486 = vmul.f32 %v1483, %v1483
        %v1487 = vadd.f32 %v1484, 0.81
        %v1488 = vadd.f32 %v1485, 0.81
        %v1489 = vadd.f32 %v1486, 0.81
        %v1490 = vrsqrt.pop %v1487
        %v1491 = vrsqrt.pop %v1488
        %v1492 = vrsqrt.pop %v1489
        %v1493 = vmul.f32 %v1481, %v1490
        %v1494 = vmul.f32 %v1482, %v1491
        %v1495 = vmul.f32 %v1483, %v1492
        %v1496 = vsub.f32 %v1372, %v390
        %v1497 = vsub.f32 %v1374, %v392
        %v1498 = vsub.f32 %v1376, %v391
        %v1499 = vmul.f32 %v1496, %v1496
        %v1500 = vmul.f32 %v1497, %v1497
        %v1501 = vmul.f32 %v1498, %v1498
        %v1502 = vadd.f32 %v1499, 0.81
        %v1503 = vadd.f32 %v1500, 0.81
        %v1504 = vadd.f32 %v1501, 0.81
        %v1505 = vrsqrt.pop %v1502
        %v1506 = vrsqrt.pop %v1503
        %v1507 = vrsqrt.pop %v1504
        %v1508 = vmul.f32 %v1496, %v1505
        %v1509 = vmul.f32 %v1497, %v1506
        %v1510 = vmul.f32 %v1498, %v1507
        %v1511 = vsub.f32 %v1493, %v1508
        %v1512 = vsub.f32 %v1494, %v1509
        %v1513 = vsub.f32 %v1495, %v1510
        %v1514 = vmul.f32 %v1511, %v1511
        %v1515 = vmul.f32 %v1512, %v1512
        %v1516 = vmul.f32 %v1513, %v1513
        %v1517 = vadd.f32 %v1514, 0.1
        %v1518 = vadd.f32 %v1515, 0.1
        %v1519 = vadd.f32 %v1516, 0.1
        %v1520 = vrcp.pop %v1517
        %v1521 = vrcp.pop %v1518
        %v1522 = vrcp.pop %v1519
        %v1526 = vrot.slane %v1520, 2
        %v1527 = vrot.slane %v1521, 2
        %v1528 = vsel %vm290, %v1526, %v1527
        %v1529 = vrot.slane %v1522, 2
        %v1530 = vsel %vm290, %v1527, %v1529
        %v1533 = vadd.f32 %v1476, %v1528
        %v1534 = vadd.f32 %v1477, %v1530
        %v1535 = vadd.f32 %v1478, %v1520
        %v1536 = vadd.f32 %v1479, %v1521
        %v1537 = vadd.f32 %v1480, %v1522
        %v1541 = vrot.slane %v1535, 3
        %v1542 = vrot.slane %v1536, 3
        %v1543 = vsel %vm225, %v1541, %v1542
        %v1544 = vrot.slane %v1537, 3
        %v1545 = vsel %vm225, %v1542, %v1544
        %1548 = vrot.lane.b32.xlu0 %v1543, 2
        %v1549 = vpop.permute.xlu0 %1548
        %1550 = vrot.lane.b32.xlu0 %v1545, 2
        %v1551 = vpop.permute.xlu0 %1550
        %v1552 = vadd.f32 %v1533, %v1549
        %v1553 = vadd.f32 %v1534, %v1551
        %1554 = vrot.lane.b32.xlu0 %v204, 125
        %v1555 = vpop.permute.xlu0 %1554
        %1556 = vrot.lane.b32.xlu0 %v205, 125
        %v1557 = vpop.permute.xlu0 %1556
        %1558 = vrot.lane.b32.xlu0 %v206, 125
        %v1559 = vpop.permute.xlu0 %1558
        %1560 = vrot.lane.b32.xlu0 %v207, 125
        %v1561 = vpop.permute.xlu0 %1560
        %1562 = vrot.lane.b32.xlu0 %v208, 125
        %v1563 = vpop.permute.xlu0 %1562
        %1564 = vrot.lane.b32.xlu0 %v209, 125
        %v1565 = vpop.permute.xlu0 %1564
        %v1566 = vsub.f32 %v1555, %v228
        %v1567 = vsub.f32 %v1557, %v230
        %v1568 = vsub.f32 %v1559, %v229
        %v1569 = vmul.f32 %v1566, %v1566
        %v1570 = vmul.f32 %v1567, %v1567
        %v1571 = vmul.f32 %v1568, %v1568
        %v1572 = vadd.f32 %v1569, 0.81
        %v1573 = vadd.f32 %v1570, 0.81
        %v1574 = vadd.f32 %v1571, 0.81
        %v1575 = vrsqrt.pop %v1572
        %v1576 = vrsqrt.pop %v1573
        %v1577 = vrsqrt.pop %v1574
        %v1578 = vmul.f32 %v1566, %v1575
        %v1579 = vmul.f32 %v1567, %v1576
        %v1580 = vmul.f32 %v1568, %v1577
        %v1581 = vsub.f32 %v1561, %v254
        %v1582 = vsub.f32 %v1563, %v256
        %v1583 = vsub.f32 %v1565, %v255
        %v1584 = vmul.f32 %v1581, %v1581
        %v1585 = vmul.f32 %v1582, %v1582
        %v1586 = vmul.f32 %v1583, %v1583
        %v1587 = vadd.f32 %v1584, 0.81
        %v1588 = vadd.f32 %v1585, 0.81
        %v1589 = vadd.f32 %v1586, 0.81
        %v1590 = vrsqrt.pop %v1587
        %v1591 = vrsqrt.pop %v1588
        %v1592 = vrsqrt.pop %v1589
        %v1593 = vmul.f32 %v1581, %v1590
        %v1594 = vmul.f32 %v1582, %v1591
        %v1595 = vmul.f32 %v1583, %v1592
        %v1596 = vsub.f32 %v1578, %v1593
        %v1597 = vsub.f32 %v1579, %v1594
        %v1598 = vsub.f32 %v1580, %v1595
        %v1599 = vmul.f32 %v1596, %v1596
        %v1600 = vmul.f32 %v1597, %v1597
        %v1601 = vmul.f32 %v1598, %v1598
        %v1602 = vadd.f32 %v1599, 0.1
        %v1603 = vadd.f32 %v1600, 0.1
        %v1604 = vadd.f32 %v1601, 0.1
        %v1605 = vrcp.pop %v1602
        %v1606 = vrcp.pop %v1603
        %v1607 = vrcp.pop %v1604
        %v1608 = vadd.f32 %v1552, %v1605
        %v1609 = vadd.f32 %v1553, %v1606
        %v1610 = vadd.f32 %v1605, 0.0
        %v1611 = vadd.f32 %v1606, 0.0
        %v1612 = vadd.f32 %v1607, 0.0
        %v1613 = vsub.f32 %v1555, %v293
        %v1614 = vsub.f32 %v1557, %v295
        %v1615 = vsub.f32 %v1559, %v294
        %v1616 = vmul.f32 %v1613, %v1613
        %v1617 = vmul.f32 %v1614, %v1614
        %v1618 = vmul.f32 %v1615, %v1615
        %v1619 = vadd.f32 %v1616, 0.81
        %v1620 = vadd.f32 %v1617, 0.81
        %v1621 = vadd.f32 %v1618, 0.81
        %v1622 = vrsqrt.pop %v1619
        %v1623 = vrsqrt.pop %v1620
        %v1624 = vrsqrt.pop %v1621
        %v1625 = vmul.f32 %v1613, %v1622
        %v1626 = vmul.f32 %v1614, %v1623
        %v1627 = vmul.f32 %v1615, %v1624
        %v1628 = vsub.f32 %v1561, %v316
        %v1629 = vsub.f32 %v1563, %v318
        %v1630 = vsub.f32 %v1565, %v317
        %v1631 = vmul.f32 %v1628, %v1628
        %v1632 = vmul.f32 %v1629, %v1629
        %v1633 = vmul.f32 %v1630, %v1630
        %v1634 = vadd.f32 %v1631, 0.81
        %v1635 = vadd.f32 %v1632, 0.81
        %v1636 = vadd.f32 %v1633, 0.81
        %v1637 = vrsqrt.pop %v1634
        %v1638 = vrsqrt.pop %v1635
        %v1639 = vrsqrt.pop %v1636
        %v1640 = vmul.f32 %v1628, %v1637
        %v1641 = vmul.f32 %v1629, %v1638
        %v1642 = vmul.f32 %v1630, %v1639
        %v1643 = vsub.f32 %v1625, %v1640
        %v1644 = vsub.f32 %v1626, %v1641
        %v1645 = vsub.f32 %v1627, %v1642
        %v1646 = vmul.f32 %v1643, %v1643
        %v1647 = vmul.f32 %v1644, %v1644
        %v1648 = vmul.f32 %v1645, %v1645
        %v1649 = vadd.f32 %v1646, 0.1
        %v1650 = vadd.f32 %v1647, 0.1
        %v1651 = vadd.f32 %v1648, 0.1
        %v1652 = vrcp.pop %v1649
        %v1653 = vrcp.pop %v1650
        %v1654 = vrcp.pop %v1651
        %v1658 = vrot.slane %v1652, 1
        %v1659 = vrot.slane %v1653, 1
        %v1660 = vsel %vm352, %v1658, %v1659
        %v1661 = vrot.slane %v1654, 1
        %v1662 = vsel %vm352, %v1659, %v1661
        %v1665 = vadd.f32 %v1608, %v1660
        %v1666 = vadd.f32 %v1609, %v1662
        %v1667 = vadd.f32 %v1610, %v1652
        %v1668 = vadd.f32 %v1611, %v1653
        %v1669 = vadd.f32 %v1612, %v1654
        %v1670 = vsub.f32 %v1555, %v367
        %v1671 = vsub.f32 %v1557, %v369
        %v1672 = vsub.f32 %v1559, %v368
        %v1673 = vmul.f32 %v1670, %v1670
        %v1674 = vmul.f32 %v1671, %v1671
        %v1675 = vmul.f32 %v1672, %v1672
        %v1676 = vadd.f32 %v1673, 0.81
        %v1677 = vadd.f32 %v1674, 0.81
        %v1678 = vadd.f32 %v1675, 0.81
        %v1679 = vrsqrt.pop %v1676
        %v1680 = vrsqrt.pop %v1677
        %v1681 = vrsqrt.pop %v1678
        %v1682 = vmul.f32 %v1670, %v1679
        %v1683 = vmul.f32 %v1671, %v1680
        %v1684 = vmul.f32 %v1672, %v1681
        %v1685 = vsub.f32 %v1561, %v390
        %v1686 = vsub.f32 %v1563, %v392
        %v1687 = vsub.f32 %v1565, %v391
        %v1688 = vmul.f32 %v1685, %v1685
        %v1689 = vmul.f32 %v1686, %v1686
        %v1690 = vmul.f32 %v1687, %v1687
        %v1691 = vadd.f32 %v1688, 0.81
        %v1692 = vadd.f32 %v1689, 0.81
        %v1693 = vadd.f32 %v1690, 0.81
        %v1694 = vrsqrt.pop %v1691
        %v1695 = vrsqrt.pop %v1692
        %v1696 = vrsqrt.pop %v1693
        %v1697 = vmul.f32 %v1685, %v1694
        %v1698 = vmul.f32 %v1686, %v1695
        %v1699 = vmul.f32 %v1687, %v1696
        %v1700 = vsub.f32 %v1682, %v1697
        %v1701 = vsub.f32 %v1683, %v1698
        %v1702 = vsub.f32 %v1684, %v1699
        %v1703 = vmul.f32 %v1700, %v1700
        %v1704 = vmul.f32 %v1701, %v1701
        %v1705 = vmul.f32 %v1702, %v1702
        %v1706 = vadd.f32 %v1703, 0.1
        %v1707 = vadd.f32 %v1704, 0.1
        %v1708 = vadd.f32 %v1705, 0.1
        %v1709 = vrcp.pop %v1706
        %v1710 = vrcp.pop %v1707
        %v1711 = vrcp.pop %v1708
        %v1715 = vrot.slane %v1709, 2
        %v1716 = vrot.slane %v1710, 2
        %v1717 = vsel %vm290, %v1715, %v1716
        %v1718 = vrot.slane %v1711, 2
        %v1719 = vsel %vm290, %v1716, %v1718
        %v1722 = vadd.f32 %v1665, %v1717
        %v1723 = vadd.f32 %v1666, %v1719
        %v1724 = vadd.f32 %v1667, %v1709
        %v1725 = vadd.f32 %v1668, %v1710
        %v1726 = vadd.f32 %v1669, %v1711
        %v1730 = vrot.slane %v1724, 3
        %v1731 = vrot.slane %v1725, 3
        %v1732 = vsel %vm225, %v1730, %v1731
        %v1733 = vrot.slane %v1726, 3
        %v1734 = vsel %vm225, %v1731, %v1733
        %1737 = vrot.lane.b32.xlu0 %v1732, 3
        %v1738 = vpop.permute.xlu0 %1737
        %1739 = vrot.lane.b32.xlu0 %v1734, 3
        %v1740 = vpop.permute.xlu0 %1739
        %v1741 = vadd.f32 %v1722, %v1738
        %v1742 = vadd.f32 %v1723, %v1740
        %1743 = vrot.lane.b32.xlu0 %v1741, 125
        %v1744 = vpop.permute.xlu0 %1743
        %1745 = vrot.lane.b32.xlu0 %v1742, 125
        %v1746 = vpop.permute.xlu0 %1745
        %v1747 = vmul.f32 %v1744, 0.0020408162
        %v1748 = vmul.f32 %v1746, 0.0020408162
        %v1749 = vsub.f32 0.97959185, %v1747
        %v1750 = vsub.f32 0.97959185, %v1748
        %v1751 = vlaneseq
        %v1752 = vshrl.u32 %v1751, 7
        %v1753 = vadd.s32 %v1752, 8
        %s1754 = smul.u32 %s21, 16
        %v1755 = vstv %s1754
        %v1756 = vadd.s32 %v1752, %v1755
        %v1757 = vadd.s32 %v1753, %v1755
        %v1758 = vlaneseq
        %v1759 = vand.u32 %v1758, 127
        %vm1760 = vcmp.ge.s32.totalorder %v1756, 1
        %vm1761 = vcmp.ge.s32.totalorder %v1757, 1
        %vm1762 = vcmp.lt.s32.totalorder %v1756, 15
        %vm1763 = vcmp.lt.s32.totalorder %v1757, 15
        %vm1764 = vmand %vm1760, %vm1762
        %vm1765 = vmand %vm1761, %vm1763
        %vm1766 = vcmp.ge.s32.totalorder %v1759, 1
        %vm1767 = vmand %vm1764, %vm1766
        %vm1768 = vmand %vm1765, %vm1766
        %vm1769 = vcmp.lt.s32.totalorder %v1759, 15
        %vm1770 = vmand %vm1767, %vm1769
        %vm1771 = vmand %vm1768, %vm1769
        %v1772 = vsel %vm1770, 1, 0
        %v1773 = vsel %vm1771, 1, 0
        %v1774 = vcvt.s32.f32 %v1772
        %v1775 = vcvt.s32.f32 %v1773
        %v1776 = vmul.f32 %v1749, %v1774
        %v1777 = vmul.f32 %v1750, %v1775
        %1778 = vst [vmem:[%s185] sm:$0xff] %v1776
        %1779 = vst [vmem:[%s185 + $0x8] sm:$0xff] %v1777
        %s1780 = sand.u32 %s94, 1
        %s1781 = scalar_lea.sflag [#allocation3], %s1780
        %s1782 = sand.u32 %s94, 1
        %s1783 = smul.addr %s1782, 16
        %s1784 = scalar_lea.vmem [#allocation2], %s1783
        // Predicated region
        $region29: #{tpu_custom_call.1} parent=27 // pred_check
          %p1785 = pneg %p104
        $region30: #{tpu_custom_call.1} parent=27 // pred_check_branch
          %1787 = sbr.rel (%p1785) target = $region32
        $region31: #{tpu_custom_call.1} parent=27 // pred_region
          %s1789 = ssub.s32 256, 256
          %1790 = vsyncadd %s1781, %s1789
          %s1791 = smul.addr %s21, 2
          %s1792 = smul.addr %s20, 2
          %s1793 = sadd.s32 %s1791, %s1792
          %s1794 = smul.addr %s1793, 128
          %s1795 = scalar_lea.hbm %s2, %s1794
          %s1796 = sshll.u32 %s1784, 4
          %s1797 = int_to_ptr.vmem [resolvable:$true] %s1796
          %1802 = dma.vmem_to_hbm [thread:$0]  %s1797, 256, %s1795, %s1781, 128, 128, 8
        $region32: #{tpu_custom_call.1} parent=27 // pred_fallthru
          _
      $region28: #{tpu_custom_call.1} parent=5 // pred_fallthru
        _
      %p1803 = scmp.le.s32.totalorder 2, %s11
      // Predicated region
      $region33: #{tpu_custom_call.1} parent=5 // pred_check
        %p1804 = pneg %p1803
      $region34: #{tpu_custom_call.1} parent=5 // pred_check_branch
        %1806 = sbr.rel (%p1804) target = $region36
      $region35: #{tpu_custom_call.1} parent=5 // pred_region
        %s1807 = ssub.s32 %s11, 2
        // Predicated region
        $region37: #{tpu_custom_call.1} parent=35 // pred_check
          %p1808 = pneg %p110
        $region38: #{tpu_custom_call.1} parent=35 // pred_check_branch
          %1810 = sbr.rel (%p1808) target = $region40
        $region39: #{tpu_custom_call.1} parent=35 // pred_region
          %s1811 = sand.u32 %s95, 1
          %s1812 = scalar_lea.sflag [#allocation3], %s1811
          %s1813 = sand.u32 %s95, 1
          %s1814 = smul.addr %s1813, 16
          %s1815 = scalar_lea.vmem [#allocation2], %s1814
          %1816 = dma.done %s1812, 256
        $region40: #{tpu_custom_call.1} parent=35 // pred_fallthru
          _
      $region36: #{tpu_custom_call.1} parent=5 // pred_fallthru
        _
    $region6: #{tpu_custom_call.1} parent=1 // loop_footer
      %s15 = sadd.s32 1, %s11
    $region7: #{tpu_custom_call.1} parent=1 // loop_footer_branch
      %10 = sbr.rel target = $region3
    $region8: #{tpu_custom_call.1} parent=1 // loop_exit
      _
    %1817 = vsyncpa [#allocation3], 1
    %s1818 = scalar_lea.sflag [#allocation3], 1
    %1819 = vsyncpa %s1818, 1

</llo_original>
